<compile_context>
chip_gen: v5e
topology: v5e:2x2
jax: 0.10.0
libtpu: 0.0.40
codegen_flags: <defaults>
</compile_context>

<pallas_src>
import functools
import math

import jax
import jax.numpy as jnp
from jax.experimental import pallas as pl
from jax.experimental.pallas import tpu as pltpu


# ------------------------------ fused kernel -------------------------------

def _mha_kernel(*refs, n_heads, d_k, d_v, scale, eps, has_mask, mxu_dtype):
    if has_mask:
        (q_ref, k_ref, v_ref, mask_ref,
         wq_ref, bq_ref, wk_ref, bk_ref, wv_ref, bv_ref,
         wo_ref, bo_ref, g_ref, beta_ref, out_ref, attn_ref) = refs
    else:
        (q_ref, k_ref, v_ref,
         wq_ref, bq_ref, wk_ref, bk_ref, wv_ref, bv_ref,
         wo_ref, bo_ref, g_ref, beta_ref, out_ref, attn_ref) = refs
        mask_ref = None

    H = n_heads
    q_in = q_ref[0]                        # (Lq, d_model)
    k_in = k_ref[0]                        # (Lk, d_model)
    v_in = v_ref[0]                        # (Lk, d_model)
    Lq, d_model = q_in.shape
    Lk = k_in.shape[0]

    # Optional bf16 MXU operands (v6e/v7x); accumulation stays f32 via
    # preferred_element_type, softmax / LayerNorm math stays f32.
    cast = (lambda x: x.astype(mxu_dtype)) if mxu_dtype is not None else (lambda x: x)

    # Head-batched projections: one batched MXU contraction per projection.
    # The activation is broadcast along the (leading, untiled) head axis; the
    # FLOP count is identical to the (L, d_model)@(d_model, H*d_k) slab form,
    # but the result lands directly in (H, L, d) layout -> no head slices, no
    # reshuffles later.
    q_b = jnp.broadcast_to(q_in[None], (H, Lq, d_model))
    k_b = jnp.broadcast_to(k_in[None], (H, Lk, d_model))
    v_b = jnp.broadcast_to(v_in[None], (H, Lk, d_model))

    qh = jnp.einsum('hld,hdk->hlk', cast(q_b), cast(wq_ref[...]),
                    preferred_element_type=jnp.float32) + bq_ref[...]
    qh = qh * scale                        # scale applied once to q, not per score tile
    kh = jnp.einsum('hld,hdk->hlk', cast(k_b), cast(wk_ref[...]),
                    preferred_element_type=jnp.float32) + bk_ref[...]
    vh = jnp.einsum('hld,hdk->hlk', cast(v_b), cast(wv_ref[...]),
                    preferred_element_type=jnp.float32) + bv_ref[...]

    # All-head attention scores with a single batched contraction.
    scores = jnp.einsum('hqd,hkd->hqk', cast(qh), cast(kh),
                        preferred_element_type=jnp.float32)    # (H, Lq, Lk)
    if has_mask:
        scores = scores + mask_ref[0][None, :, :]              # additive 0 / -1e9

    smax = jnp.max(scores, axis=-1, keepdims=True)
    e = jnp.exp(scores - smax)
    denom = jnp.sum(e, axis=-1, keepdims=True)
    attn = e / denom                       # exact: stored attention maps sum to 1
    attn_ref[0] = attn.astype(attn_ref.dtype)

    # Context and output projection, still head-batched; the head reduction is
    # a leading-axis sum -> no concatenate, no transpose.
    ctx = jnp.einsum('hqk,hkd->hqd', cast(attn), cast(vh),
                     preferred_element_type=jnp.float32)        # (H, Lq, d_v)
    out_h = jnp.einsum('hqd,hdm->hqm', cast(ctx), cast(wo_ref[...]),
                       preferred_element_type=jnp.float32)      # (H, Lq, d_model)
    out = jnp.sum(out_h, axis=0) + bo_ref[...]                  # (Lq, d_model)

    # Residual + LayerNorm (single centered pass).
    y = out + q_in
    mean = jnp.mean(y, axis=-1, keepdims=True)
    yc = y - mean
    var = jnp.mean(yc * yc, axis=-1, keepdims=True)
    yn = yc * jax.lax.rsqrt(var + eps)
    out_ref[0] = (yn * g_ref[...] + beta_ref[...]).astype(out_ref.dtype)


# ------------------------------ wrapper -------------------------------------

def multi_head_attention(Q, K, V, attn_mask, p, cfg, *, mxu_dtype=None):
    """Q: (B, Lq, d_model), K/V: (B, Lk, d_model).
    attn_mask: (B, Lq, Lk) bool/0-1 (True == masked) or None.
    Returns (LayerNorm(W_O(attn@V) + Q), attn) matching the PyTorch module.
    mxu_dtype: set to jnp.bfloat16 on v6e/v7x to feed the MXU bf16 operands."""
    B, Lq, d_model = Q.shape
    Lk = K.shape[1]
    H, d_k, d_v = cfg["n_heads"], cfg["d_k"], cfg["d_v"]
    scale = 1.0 / math.sqrt(d_k)
    has_mask = attn_mask is not None

    # Head-major weight layouts (tiny one-time XLA reshapes, outside the kernel).
    wq_h = p["wq"].reshape(d_model, H, d_k).transpose(1, 0, 2)   # (H, d_model, d_k)
    wk_h = p["wk"].reshape(d_model, H, d_k).transpose(1, 0, 2)
    wv_h = p["wv"].reshape(d_model, H, d_v).transpose(1, 0, 2)
    wo_h = p["wo"].reshape(H, d_v, d_model)                      # pure reshape
    bq_h = p["bq"].reshape(H, 1, d_k)
    bk_h = p["bk"].reshape(H, 1, d_k)
    bv_h = p["bv"].reshape(H, 1, d_v)
    bo = p["bo"].reshape(1, d_model)
    ln_g = p["ln_g"].reshape(1, d_model)
    ln_b = p["ln_b"].reshape(1, d_model)

    kernel = functools.partial(
        _mha_kernel, n_heads=H, d_k=d_k, d_v=d_v, scale=scale, eps=1e-5,
        has_mask=has_mask, mxu_dtype=mxu_dtype)

    batch3 = lambda b: (b, 0, 0)
    batch4 = lambda b: (b, 0, 0, 0)
    full2 = lambda b: (0, 0)
    full3 = lambda b: (0, 0, 0)

    in_specs = [
        pl.BlockSpec((1, Lq, d_model), batch3),      # Q
        pl.BlockSpec((1, Lk, d_model), batch3),      # K
        pl.BlockSpec((1, Lk, d_model), batch3),      # V
    ]
    args = [Q, K, V]
    if has_mask:
        # Additive mask built once; when attn_mask is None no mask stream exists.
        mask_add = jnp.where(attn_mask.astype(jnp.bool_),
                             jnp.float32(-1e9), jnp.float32(0.0))
        in_specs.append(pl.BlockSpec((1, Lq, Lk), batch3))
        args.append(mask_add)
    in_specs += [
        pl.BlockSpec((H, d_model, d_k), full3),      # W_Q (head-major)
        pl.BlockSpec((H, 1, d_k), full3),            # b_Q
        pl.BlockSpec((H, d_model, d_k), full3),      # W_K
        pl.BlockSpec((H, 1, d_k), full3),            # b_K
        pl.BlockSpec((H, d_model, d_v), full3),      # W_V
        pl.BlockSpec((H, 1, d_v), full3),            # b_V
        pl.BlockSpec((H, d_v, d_model), full3),      # W_O (head-major)
        pl.BlockSpec((1, d_model), full2),           # b_O
        pl.BlockSpec((1, d_model), full2),           # ln gamma
        pl.BlockSpec((1, d_model), full2),           # ln beta
    ]
    args += [wq_h, bq_h, wk_h, bk_h, wv_h, bv_h, wo_h, bo, ln_g, ln_b]

    out, attn = pl.pallas_call(
        kernel,
        out_shape=(
            jax.ShapeDtypeStruct((B, Lq, d_model), Q.dtype),
            jax.ShapeDtypeStruct((B, H, Lq, Lk), jnp.float32),
        ),
        grid=(B,),
        in_specs=in_specs,
        out_specs=(
            pl.BlockSpec((1, Lq, d_model), batch3),
            pl.BlockSpec((1, H, Lq, Lk), batch4),
        ),
        compiler_params=pltpu.CompilerParams(
            dimension_semantics=("parallel",)),
    )(*args)
    return out, attn


# ------------------------------ pure-JAX reference --------------------------

def mha_reference(Q, K, V, attn_mask, p, cfg):
    B, Lq, d_model = Q.shape
    Lk = K.shape[1]
    H, dk, dv = cfg["n_heads"], cfg["d_k"], cfg["d_v"]
    q = (Q @ p["wq"] + p["bq"]).reshape(B, Lq, H, dk).transpose(0, 2, 1, 3)
    k = (K @ p["wk"] + p["bk"]).reshape(B, Lk, H, dk).transpose(0, 2, 1, 3)
    v = (V @ p["wv"] + p["bv"]).reshape(B, Lk, H, dv).transpose(0, 2, 1, 3)
    scores = jnp.einsum("bhqd,bhkd->bhqk", q, k) / math.sqrt(dk)
    if attn_mask is not None:
        scores = jnp.where(attn_mask[:, None, :, :].astype(bool),
                           jnp.float32(-1e9), scores)
    attn = jax.nn.softmax(scores, axis=-1)
    ctx = jnp.einsum("bhqk,bhkd->bhqd", attn, v)
    ctx = ctx.transpose(0, 2, 1, 3).reshape(B, Lq, H * dv)
    out = ctx @ p["wo"] + p["bo"] + Q
    mean = out.mean(-1, keepdims=True)
    var = ((out - mean) ** 2).mean(-1, keepdims=True)
    out = (out - mean) / jnp.sqrt(var + 1e-5) * p["ln_g"] + p["ln_b"]
    return out, attn


# ------------------------------ parameter init ------------------------------

def init_params(key, cfg):
    d_model, d_k, d_v, H = cfg["d_model"], cfg["d_k"], cfg["d_v"], cfg["n_heads"]

    def lin(k, fan_in, fan_out):
        kw, kb = jax.random.split(k)
        w = jax.random.normal(kw, (fan_in, fan_out), jnp.float32) * 0.05
        b = jax.random.normal(kb, (fan_out,), jnp.float32) * 0.05
        return w, b

    k = jax.random.split(key, 4)
    wq, bq = lin(k[0], d_model, H * d_k)
    wk, bk = lin(k[1], d_model, H * d_k)
    wv, bv = lin(k[2], d_model, H * d_v)
    wo, bo = lin(k[3], H * d_v, d_model)
    return dict(wq=wq, bq=bq, wk=wk, bk=bk, wv=wv, bv=bv, wo=wo, bo=bo,
                ln_g=jnp.ones((d_model,), jnp.float32),
                ln_b=jnp.zeros((d_model,), jnp.float32))


# ---------------------------------- main ------------------------------------

if __name__ == "__main__":
    cfg = dict(d_model=32, d_k=8, d_v=8, n_heads=4)
    B, L = 2, 8

    key = jax.random.PRNGKey(0)
    kx, kp = jax.random.split(key)
    x = jax.random.normal(kx, (B, L, cfg["d_model"]), jnp.float32)

    # Self-attention usage: Q = K = V = x, pad-style key mask (True == masked).
    attn_mask = jnp.zeros((B, L, L), jnp.bool_).at[1, :, -2:].set(True)

    params = init_params(kp, cfg)

    out, attn = multi_head_attention(x, x, x, attn_mask, params, cfg)
    jax.block_until_ready((out, attn))

    assert out.shape == (B, L, cfg["d_model"])
    assert attn.shape == (B, cfg["n_heads"], L, L)
    assert bool(jnp.all(jnp.isfinite(out)))

    out_exp, attn_exp = mha_reference(x, x, x, attn_mask, params, cfg)
    assert bool(jnp.allclose(out, out_exp, atol=1e-2, rtol=1e-2))
    assert bool(jnp.allclose(attn, attn_exp, atol=1e-3, rtol=1e-2))
    # Exact softmax divide: rows sum to 1 (review correctness concern).
    assert bool(jnp.allclose(attn.sum(-1), 1.0, atol=1e-5))

    # Mask-free path: the mask input / BlockSpec / HBM stream are dropped.
    out2, attn2 = multi_head_attention(x, x, x, None, params, cfg)
    jax.block_until_ready((out2, attn2))
    out2_exp, attn2_exp = mha_reference(x, x, x, None, params, cfg)
    assert bool(jnp.allclose(out2, out2_exp, atol=1e-2, rtol=1e-2))
    assert bool(jnp.allclose(attn2, attn2_exp, atol=1e-3, rtol=1e-2))

    print("KERNEL_OK")
</pallas_src>

<mosaic_0001>
module attributes {stable_mosaic.version = 11 : i64} {
  func.func @_mha_kernel(%arg0: i32, %arg1: memref<1x8x32xf32, #tpu.memory_space<vmem>>, %arg2: memref<1x8x32xf32, #tpu.memory_space<vmem>>, %arg3: memref<1x8x32xf32, #tpu.memory_space<vmem>>, %arg4: memref<1x8x8xf32, #tpu.memory_space<vmem>>, %arg5: memref<4x32x8xf32, #tpu.memory_space<vmem>>, %arg6: memref<4x1x8xf32, #tpu.memory_space<vmem>>, %arg7: memref<4x32x8xf32, #tpu.memory_space<vmem>>, %arg8: memref<4x1x8xf32, #tpu.memory_space<vmem>>, %arg9: memref<4x32x8xf32, #tpu.memory_space<vmem>>, %arg10: memref<4x1x8xf32, #tpu.memory_space<vmem>>, %arg11: memref<4x8x32xf32, #tpu.memory_space<vmem>>, %arg12: memref<1x32xf32, #tpu.memory_space<vmem>>, %arg13: memref<1x32xf32, #tpu.memory_space<vmem>>, %arg14: memref<1x32xf32, #tpu.memory_space<vmem>>, %arg15: memref<1x8x32xf32, #tpu.memory_space<vmem>>, %arg16: memref<1x4x8x8xf32, #tpu.memory_space<vmem>>) attributes {dimension_semantics = [#tpu.dimension_semantics<parallel>], iteration_bounds = array<i64: 2>, scalar_prefetch = 0 : i64, scratch_operands = 0 : i64, tpu.core_type = #tpu.core_type<tc>, window_params = [{transform_indices = @transform_0, window_bounds = array<i64: 1, 8, 32>}, {transform_indices = @transform_1, window_bounds = array<i64: 1, 8, 32>}, {transform_indices = @transform_2, window_bounds = array<i64: 1, 8, 32>}, {transform_indices = @transform_3, window_bounds = array<i64: 1, 8, 8>}, {pipeline_mode = #tpu.pipeline_mode<synchronous>, transform_indices = @transform_4, window_bounds = array<i64: 4, 32, 8>}, {pipeline_mode = #tpu.pipeline_mode<synchronous>, transform_indices = @transform_5, window_bounds = array<i64: 4, 1, 8>}, {pipeline_mode = #tpu.pipeline_mode<synchronous>, transform_indices = @transform_6, window_bounds = array<i64: 4, 32, 8>}, {pipeline_mode = #tpu.pipeline_mode<synchronous>, transform_indices = @transform_7, window_bounds = array<i64: 4, 1, 8>}, {pipeline_mode = #tpu.pipeline_mode<synchronous>, transform_indices = @transform_8, window_bounds = array<i64: 4, 32, 8>}, {pipeline_mode = #tpu.pipeline_mode<synchronous>, transform_indices = @transform_9, window_bounds = array<i64: 4, 1, 8>}, {pipeline_mode = #tpu.pipeline_mode<synchronous>, transform_indices = @transform_10, window_bounds = array<i64: 4, 8, 32>}, {pipeline_mode = #tpu.pipeline_mode<synchronous>, transform_indices = @transform_11, window_bounds = array<i64: 1, 32>}, {pipeline_mode = #tpu.pipeline_mode<synchronous>, transform_indices = @transform_12, window_bounds = array<i64: 1, 32>}, {pipeline_mode = #tpu.pipeline_mode<synchronous>, transform_indices = @transform_13, window_bounds = array<i64: 1, 32>}, {transform_indices = @transform_14, window_bounds = array<i64: 1, 8, 32>}, {transform_indices = @transform_15, window_bounds = array<i64: 1, 4, 8, 8>}]} {
    %c0 = arith.constant 0 : index
    %c0_0 = arith.constant 0 : index
    %c0_1 = arith.constant 0 : index
    %0 = vector.load %arg1[%c0, %c0_0, %c0_1] : memref<1x8x32xf32, #tpu.memory_space<vmem>>, vector<1x8x32xf32>
    %1 = vector.shape_cast %0 : vector<1x8x32xf32> to vector<8x32xf32>
    %c0_2 = arith.constant 0 : index
    %c0_3 = arith.constant 0 : index
    %c0_4 = arith.constant 0 : index
    %2 = vector.load %arg2[%c0_2, %c0_3, %c0_4] : memref<1x8x32xf32, #tpu.memory_space<vmem>>, vector<1x8x32xf32>
    %3 = vector.shape_cast %2 : vector<1x8x32xf32> to vector<8x32xf32>
    %c0_5 = arith.constant 0 : index
    %c0_6 = arith.constant 0 : index
    %c0_7 = arith.constant 0 : index
    %4 = vector.load %arg3[%c0_5, %c0_6, %c0_7] : memref<1x8x32xf32, #tpu.memory_space<vmem>>, vector<1x8x32xf32>
    %5 = vector.shape_cast %4 : vector<1x8x32xf32> to vector<8x32xf32>
    %6 = vector.shape_cast %1 : vector<8x32xf32> to vector<1x8x32xf32>
    %7 = vector.shape_cast %6 : vector<1x8x32xf32> to vector<1x8x32xf32>
    %8 = vector.broadcast %7 : vector<1x8x32xf32> to vector<4x8x32xf32>
    %9 = vector.shape_cast %3 : vector<8x32xf32> to vector<1x8x32xf32>
    %10 = vector.shape_cast %9 : vector<1x8x32xf32> to vector<1x8x32xf32>
    %11 = vector.broadcast %10 : vector<1x8x32xf32> to vector<4x8x32xf32>
    %12 = vector.shape_cast %5 : vector<8x32xf32> to vector<1x8x32xf32>
    %13 = vector.shape_cast %12 : vector<1x8x32xf32> to vector<1x8x32xf32>
    %14 = vector.broadcast %13 : vector<1x8x32xf32> to vector<4x8x32xf32>
    %c0_8 = arith.constant 0 : index
    %c0_9 = arith.constant 0 : index
    %c0_10 = arith.constant 0 : index
    %15 = vector.load %arg5[%c0_8, %c0_9, %c0_10] : memref<4x32x8xf32, #tpu.memory_space<vmem>>, vector<4x32x8xf32>
    "tpu.trace_start"() <{level = 10 : i32, message = "hld,hdk->hlk"}> : () -> ()
    %cst = arith.constant dense<0.000000e+00> : vector<4x8x8xf32>
    %16 = tpu.matmul %8, %15, %cst {dimension_numbers = #tpu.dot_dimension_numbers<[2], [1], [1], [2], [0, 0, 0, 1, 1, 2], [0], [0]>} : vector<4x8x32xf32>, vector<4x32x8xf32>, vector<4x8x8xf32> -> vector<4x8x8xf32>
    "tpu.trace_stop"() : () -> ()
    %c0_11 = arith.constant 0 : index
    %c0_12 = arith.constant 0 : index
    %c0_13 = arith.constant 0 : index
    %17 = vector.load %arg6[%c0_11, %c0_12, %c0_13] : memref<4x1x8xf32, #tpu.memory_space<vmem>>, vector<4x1x8xf32>
    %18 = vector.broadcast %17 : vector<4x1x8xf32> to vector<4x8x8xf32>
    %19 = arith.addf %16, %18 : vector<4x8x8xf32>
    %cst_14 = arith.constant 0.353553385 : f32
    %20 = vector.broadcast %cst_14 : f32 to vector<4x8x8xf32>
    %21 = arith.mulf %19, %20 : vector<4x8x8xf32>
    %c0_15 = arith.constant 0 : index
    %c0_16 = arith.constant 0 : index
    %c0_17 = arith.constant 0 : index
    %22 = vector.load %arg7[%c0_15, %c0_16, %c0_17] : memref<4x32x8xf32, #tpu.memory_space<vmem>>, vector<4x32x8xf32>
    "tpu.trace_start"() <{level = 10 : i32, message = "hld,hdk->hlk"}> : () -> ()
    %cst_18 = arith.constant dense<0.000000e+00> : vector<4x8x8xf32>
    %23 = tpu.matmul %11, %22, %cst_18 {dimension_numbers = #tpu.dot_dimension_numbers<[2], [1], [1], [2], [0, 0, 0, 1, 1, 2], [0], [0]>} : vector<4x8x32xf32>, vector<4x32x8xf32>, vector<4x8x8xf32> -> vector<4x8x8xf32>
    "tpu.trace_stop"() : () -> ()
    %c0_19 = arith.constant 0 : index
    %c0_20 = arith.constant 0 : index
    %c0_21 = arith.constant 0 : index
    %24 = vector.load %arg8[%c0_19, %c0_20, %c0_21] : memref<4x1x8xf32, #tpu.memory_space<vmem>>, vector<4x1x8xf32>
    %25 = vector.broadcast %24 : vector<4x1x8xf32> to vector<4x8x8xf32>
    %26 = arith.addf %23, %25 : vector<4x8x8xf32>
    %c0_22 = arith.constant 0 : index
    %c0_23 = arith.constant 0 : index
    %c0_24 = arith.constant 0 : index
    %27 = vector.load %arg9[%c0_22, %c0_23, %c0_24] : memref<4x32x8xf32, #tpu.memory_space<vmem>>, vector<4x32x8xf32>
    "tpu.trace_start"() <{level = 10 : i32, message = "hld,hdk->hlk"}> : () -> ()
    %cst_25 = arith.constant dense<0.000000e+00> : vector<4x8x8xf32>
    %28 = tpu.matmul %14, %27, %cst_25 {dimension_numbers = #tpu.dot_dimension_numbers<[2], [1], [1], [2], [0, 0, 0, 1, 1, 2], [0], [0]>} : vector<4x8x32xf32>, vector<4x32x8xf32>, vector<4x8x8xf32> -> vector<4x8x8xf32>
    "tpu.trace_stop"() : () -> ()
    %c0_26 = arith.constant 0 : index
    %c0_27 = arith.constant 0 : index
    %c0_28 = arith.constant 0 : index
    %29 = vector.load %arg10[%c0_26, %c0_27, %c0_28] : memref<4x1x8xf32, #tpu.memory_space<vmem>>, vector<4x1x8xf32>
    %30 = vector.broadcast %29 : vector<4x1x8xf32> to vector<4x8x8xf32>
    %31 = arith.addf %28, %30 : vector<4x8x8xf32>
    "tpu.trace_start"() <{level = 10 : i32, message = "hqd,hkd->hqk"}> : () -> ()
    %cst_29 = arith.constant dense<0.000000e+00> : vector<4x8x8xf32>
    %32 = tpu.matmul %21, %26, %cst_29 {dimension_numbers = #tpu.dot_dimension_numbers<[2], [2], [1], [1], [0, 0, 0, 1, 1, 1], [0], [0]>} : vector<4x8x8xf32>, vector<4x8x8xf32>, vector<4x8x8xf32> -> vector<4x8x8xf32>
    "tpu.trace_stop"() : () -> ()
    %c0_30 = arith.constant 0 : index
    %c0_31 = arith.constant 0 : index
    %c0_32 = arith.constant 0 : index
    %33 = vector.load %arg4[%c0_30, %c0_31, %c0_32] : memref<1x8x8xf32, #tpu.memory_space<vmem>>, vector<1x8x8xf32>
    %34 = vector.shape_cast %33 : vector<1x8x8xf32> to vector<8x8xf32>
    %35 = vector.shape_cast %34 : vector<8x8xf32> to vector<1x8x8xf32>
    %36 = vector.broadcast %35 : vector<1x8x8xf32> to vector<4x8x8xf32>
    %37 = arith.addf %32, %36 : vector<4x8x8xf32>
    %cst_33 = arith.constant dense<0xFF800000> : vector<4x8xf32>
    %38 = vector.multi_reduction <maximumf>, %37, %cst_33 [2] : vector<4x8x8xf32> to vector<4x8xf32>
    %39 = vector.shape_cast %38 : vector<4x8xf32> to vector<4x8x1xf32>
    %40 = vector.broadcast %39 : vector<4x8x1xf32> to vector<4x8x8xf32>
    %41 = arith.subf %37, %40 : vector<4x8x8xf32>
    %42 = math.exp %41 : vector<4x8x8xf32>
    %cst_34 = arith.constant dense<0.000000e+00> : vector<4x8xf32>
    %43 = vector.multi_reduction <add>, %42, %cst_34 [2] : vector<4x8x8xf32> to vector<4x8xf32>
    %44 = vector.shape_cast %43 : vector<4x8xf32> to vector<4x8x1xf32>
    %45 = vector.broadcast %44 : vector<4x8x1xf32> to vector<4x8x8xf32>
    %46 = arith.divf %42, %45 : vector<4x8x8xf32>
    %c0_35 = arith.constant 0 : index
    %c0_36 = arith.constant 0 : index
    %c0_37 = arith.constant 0 : index
    %c0_38 = arith.constant 0 : index
    %47 = vector.load %arg16[%c0_35, %c0_36, %c0_37, %c0_38] : memref<1x4x8x8xf32, #tpu.memory_space<vmem>>, vector<1x4x8x8xf32>
    %48 = vector.shape_cast %47 : vector<1x4x8x8xf32> to vector<4x8x8xf32>
    %49 = vector.shape_cast %46 : vector<4x8x8xf32> to vector<1x4x8x8xf32>
    tpu.vector_store %arg16[%c0_35, %c0_36, %c0_37, %c0_38], %49 {strides = array<i32>} : memref<1x4x8x8xf32, #tpu.memory_space<vmem>>, vector<1x4x8x8xf32>,
    "tpu.trace_start"() <{level = 10 : i32, message = "hqk,hkd->hqd"}> : () -> ()
    %cst_39 = arith.constant dense<0.000000e+00> : vector<4x8x8xf32>
    %50 = tpu.matmul %46, %31, %cst_39 {dimension_numbers = #tpu.dot_dimension_numbers<[2], [1], [1], [2], [0, 0, 0, 1, 1, 2], [0], [0]>} : vector<4x8x8xf32>, vector<4x8x8xf32>, vector<4x8x8xf32> -> vector<4x8x8xf32>
    "tpu.trace_stop"() : () -> ()
    %c0_40 = arith.constant 0 : index
    %c0_41 = arith.constant 0 : index
    %c0_42 = arith.constant 0 : index
    %51 = vector.load %arg11[%c0_40, %c0_41, %c0_42] : memref<4x8x32xf32, #tpu.memory_space<vmem>>, vector<4x8x32xf32>
    "tpu.trace_start"() <{level = 10 : i32, message = "hqd,hdm->hqm"}> : () -> ()
    %cst_43 = arith.constant dense<0.000000e+00> : vector<4x8x32xf32>
    %52 = tpu.matmul %50, %51, %cst_43 {dimension_numbers = #tpu.dot_dimension_numbers<[2], [1], [1], [2], [0, 0, 0, 1, 1, 2], [0], [0]>} : vector<4x8x8xf32>, vector<4x8x32xf32>, vector<4x8x32xf32> -> vector<4x8x32xf32>
    "tpu.trace_stop"() : () -> ()
    %cst_44 = arith.constant dense<0.000000e+00> : vector<8x32xf32>
    %53 = vector.multi_reduction <add>, %52, %cst_44 [0] : vector<4x8x32xf32> to vector<8x32xf32>
    %c0_45 = arith.constant 0 : index
    %c0_46 = arith.constant 0 : index
    %54 = vector.load %arg12[%c0_45, %c0_46] : memref<1x32xf32, #tpu.memory_space<vmem>>, vector<1x32xf32>
    %55 = vector.broadcast %54 : vector<1x32xf32> to vector<8x32xf32>
    %56 = arith.addf %53, %55 : vector<8x32xf32>
    %57 = arith.addf %56, %1 : vector<8x32xf32>
    %cst_47 = arith.constant dense<0.000000e+00> : vector<8xf32>
    %58 = vector.multi_reduction <add>, %57, %cst_47 [1] : vector<8x32xf32> to vector<8xf32>
    %59 = vector.shape_cast %58 : vector<8xf32> to vector<8x1xf32>
    %cst_48 = arith.constant 3.200000e+01 : f32
    %60 = vector.broadcast %cst_48 : f32 to vector<8x1xf32>
    %61 = arith.divf %59, %60 : vector<8x1xf32>
    %62 = vector.broadcast %61 : vector<8x1xf32> to vector<8x32xf32>
    %63 = arith.subf %57, %62 : vector<8x32xf32>
    %64 = arith.mulf %63, %63 : vector<8x32xf32>
    %cst_49 = arith.constant dense<0.000000e+00> : vector<8xf32>
    %65 = vector.multi_reduction <add>, %64, %cst_49 [1] : vector<8x32xf32> to vector<8xf32>
    %66 = vector.shape_cast %65 : vector<8xf32> to vector<8x1xf32>
    %cst_50 = arith.constant 3.200000e+01 : f32
    %67 = vector.broadcast %cst_50 : f32 to vector<8x1xf32>
    %68 = arith.divf %66, %67 : vector<8x1xf32>
    %cst_51 = arith.constant 9.99999974E-6 : f32
    %69 = vector.broadcast %cst_51 : f32 to vector<8x1xf32>
    %70 = arith.addf %68, %69 : vector<8x1xf32>
    %71 = math.rsqrt %70 : vector<8x1xf32>
    %72 = vector.broadcast %71 : vector<8x1xf32> to vector<8x32xf32>
    %73 = arith.mulf %63, %72 : vector<8x32xf32>
    %c0_52 = arith.constant 0 : index
    %c0_53 = arith.constant 0 : index
    %74 = vector.load %arg13[%c0_52, %c0_53] : memref<1x32xf32, #tpu.memory_space<vmem>>, vector<1x32xf32>
    %75 = vector.broadcast %74 : vector<1x32xf32> to vector<8x32xf32>
    %76 = arith.mulf %73, %75 : vector<8x32xf32>
    %c0_54 = arith.constant 0 : index
    %c0_55 = arith.constant 0 : index
    %77 = vector.load %arg14[%c0_54, %c0_55] : memref<1x32xf32, #tpu.memory_space<vmem>>, vector<1x32xf32>
    %78 = vector.broadcast %77 : vector<1x32xf32> to vector<8x32xf32>
    %79 = arith.addf %76, %78 : vector<8x32xf32>
    %c0_56 = arith.constant 0 : index
    %c0_57 = arith.constant 0 : index
    %c0_58 = arith.constant 0 : index
    %80 = vector.load %arg15[%c0_56, %c0_57, %c0_58] : memref<1x8x32xf32, #tpu.memory_space<vmem>>, vector<1x8x32xf32>
    %81 = vector.shape_cast %80 : vector<1x8x32xf32> to vector<8x32xf32>
    %82 = vector.shape_cast %79 : vector<8x32xf32> to vector<1x8x32xf32>
    tpu.vector_store %arg15[%c0_56, %c0_57, %c0_58], %82 {strides = array<i32>} : memref<1x8x32xf32, #tpu.memory_space<vmem>>, vector<1x8x32xf32>,
    return
  }
  func.func @transform_0(%arg0: i32) -> (i32, i32, i32) {
    %c0_i32 = arith.constant 0 : i32
    %c0_i32_0 = arith.constant 0 : i32
    %c0_i32_1 = arith.constant 0 : i32
    return %arg0, %c0_i32, %c0_i32_0 : i32, i32, i32
  }
  func.func @transform_1(%arg0: i32) -> (i32, i32, i32) {
    %c0_i32 = arith.constant 0 : i32
    %c0_i32_0 = arith.constant 0 : i32
    %c0_i32_1 = arith.constant 0 : i32
    return %arg0, %c0_i32, %c0_i32_0 : i32, i32, i32
  }
  func.func @transform_2(%arg0: i32) -> (i32, i32, i32) {
    %c0_i32 = arith.constant 0 : i32
    %c0_i32_0 = arith.constant 0 : i32
    %c0_i32_1 = arith.constant 0 : i32
    return %arg0, %c0_i32, %c0_i32_0 : i32, i32, i32
  }
  func.func @transform_3(%arg0: i32) -> (i32, i32, i32) {
    %c0_i32 = arith.constant 0 : i32
    %c0_i32_0 = arith.constant 0 : i32
    %c0_i32_1 = arith.constant 0 : i32
    return %arg0, %c0_i32, %c0_i32_0 : i32, i32, i32
  }
  func.func @transform_4(%arg0: i32) -> (i32, i32, i32) {
    %c0_i32 = arith.constant 0 : i32
    %c0_i32_0 = arith.constant 0 : i32
    %c0_i32_1 = arith.constant 0 : i32
    %c0_i32_2 = arith.constant 0 : i32
    return %c0_i32, %c0_i32_0, %c0_i32_1 : i32, i32, i32
  }
  func.func @transform_5(%arg0: i32) -> (i32, i32, i32) {
    %c0_i32 = arith.constant 0 : i32
    %c0_i32_0 = arith.constant 0 : i32
    %c0_i32_1 = arith.constant 0 : i32
    %c0_i32_2 = arith.constant 0 : i32
    return %c0_i32, %c0_i32_0, %c0_i32_1 : i32, i32, i32
  }
  func.func @transform_6(%arg0: i32) -> (i32, i32, i32) {
    %c0_i32 = arith.constant 0 : i32
    %c0_i32_0 = arith.constant 0 : i32
    %c0_i32_1 = arith.constant 0 : i32
    %c0_i32_2 = arith.constant 0 : i32
    return %c0_i32, %c0_i32_0, %c0_i32_1 : i32, i32, i32
  }
  func.func @transform_7(%arg0: i32) -> (i32, i32, i32) {
    %c0_i32 = arith.constant 0 : i32
    %c0_i32_0 = arith.constant 0 : i32
    %c0_i32_1 = arith.constant 0 : i32
    %c0_i32_2 = arith.constant 0 : i32
    return %c0_i32, %c0_i32_0, %c0_i32_1 : i32, i32, i32
  }
  func.func @transform_8(%arg0: i32) -> (i32, i32, i32) {
    %c0_i32 = arith.constant 0 : i32
    %c0_i32_0 = arith.constant 0 : i32
    %c0_i32_1 = arith.constant 0 : i32
    %c0_i32_2 = arith.constant 0 : i32
    return %c0_i32, %c0_i32_0, %c0_i32_1 : i32, i32, i32
  }
  func.func @transform_9(%arg0: i32) -> (i32, i32, i32) {
    %c0_i32 = arith.constant 0 : i32
    %c0_i32_0 = arith.constant 0 : i32
    %c0_i32_1 = arith.constant 0 : i32
    %c0_i32_2 = arith.constant 0 : i32
    return %c0_i32, %c0_i32_0, %c0_i32_1 : i32, i32, i32
  }
  func.func @transform_10(%arg0: i32) -> (i32, i32, i32) {
    %c0_i32 = arith.constant 0 : i32
    %c0_i32_0 = arith.constant 0 : i32
    %c0_i32_1 = arith.constant 0 : i32
    %c0_i32_2 = arith.constant 0 : i32
    return %c0_i32, %c0_i32_0, %c0_i32_1 : i32, i32, i32
  }
  func.func @transform_11(%arg0: i32) -> (i32, i32) {
    %c0_i32 = arith.constant 0 : i32
    %c0_i32_0 = arith.constant 0 : i32
    %c0_i32_1 = arith.constant 0 : i32
    return %c0_i32, %c0_i32_0 : i32, i32
  }
  func.func @transform_12(%arg0: i32) -> (i32, i32) {
    %c0_i32 = arith.constant 0 : i32
    %c0_i32_0 = arith.constant 0 : i32
    %c0_i32_1 = arith.constant 0 : i32
    return %c0_i32, %c0_i32_0 : i32, i32
  }
  func.func @transform_13(%arg0: i32) -> (i32, i32) {
    %c0_i32 = arith.constant 0 : i32
    %c0_i32_0 = arith.constant 0 : i32
    %c0_i32_1 = arith.constant 0 : i32
    return %c0_i32, %c0_i32_0 : i32, i32
  }
  func.func @transform_14(%arg0: i32) -> (i32, i32, i32) {
    %c0_i32 = arith.constant 0 : i32
    %c0_i32_0 = arith.constant 0 : i32
    %c0_i32_1 = arith.constant 0 : i32
    return %arg0, %c0_i32, %c0_i32_0 : i32, i32, i32
  }
  func.func @transform_15(%arg0: i32) -> (i32, i32, i32, i32) {
    %c0_i32 = arith.constant 0 : i32
    %c0_i32_0 = arith.constant 0 : i32
    %c0_i32_1 = arith.constant 0 : i32
    %c0_i32_2 = arith.constant 0 : i32
    return %arg0, %c0_i32, %c0_i32_0, %c0_i32_1 : i32, i32, i32, i32
  }
}

</mosaic_0001>

<llo_original>
// kernel: tpu_custom_call.1
$region0: #{tpu_custom_call.1}
  #allocation0 [shape = 'u32[]', space=smem, size = 0x4, offset = 0x4, fixed_abs, tag = 'smem constant byte address 0x4 - core index']
  #allocation1 [shape = 'u32[72,128]{1,0:T(1,128)}', space=vmem, size = 0x9000, scoped, tag = 'internal scratch']
  %s0 = inlined_call_operand.vmem [shape: f32[2,8,32], index: 0, kind: input, shape index: {}]
  %s1 = inlined_call_operand.vmem [shape: f32[2,8,32], index: 1, kind: input, shape index: {}]
  %s2 = inlined_call_operand.vmem [shape: f32[2,8,32], index: 2, kind: input, shape index: {}]
  %s3 = inlined_call_operand.vmem [shape: f32[2,8,8], index: 3, kind: input, shape index: {}]
  %s4 = inlined_call_operand.vmem [shape: f32[4,32,8], index: 4, kind: input, shape index: {}]
  %s5 = inlined_call_operand.vmem [shape: f32[4,1,8], index: 5, kind: input, shape index: {}]
  %s6 = inlined_call_operand.vmem [shape: f32[4,32,8], index: 6, kind: input, shape index: {}]
  %s7 = inlined_call_operand.vmem [shape: f32[4,1,8], index: 7, kind: input, shape index: {}]
  %s8 = inlined_call_operand.vmem [shape: f32[4,32,8], index: 8, kind: input, shape index: {}]
  %s9 = inlined_call_operand.vmem [shape: f32[4,1,8], index: 9, kind: input, shape index: {}]
  %s10 = inlined_call_operand.vmem [shape: f32[4,8,32], index: 10, kind: input, shape index: {}]
  %s11 = inlined_call_operand.vmem [shape: f32[1,32], index: 11, kind: input, shape index: {}]
  %s12 = inlined_call_operand.vmem [shape: f32[1,32], index: 12, kind: input, shape index: {}]
  %s13 = inlined_call_operand.vmem [shape: f32[1,32], index: 13, kind: input, shape index: {}]
  %s14 = inlined_call_operand.hbm [shape: f32[2,8,32], index: 14, kind: output, shape index: {0}]
  %s15 = inlined_call_operand.hbm [shape: f32[2,4,8,8], index: 15, kind: output, shape index: {1}]
  %16 = xla_tuple %s14, %s15
  %s17 = sld [smem:[#allocation0]]
  $region97: #{tpu_custom_call.1} parent=0
    _
  %s19 = ssub.s32 1, %s17
  %s20 = scalar_select 0, %s19, %s17
  $region1: #{tpu_custom_call.1} parent=0
    #allocation2 [shape = 'u8[8192]{0}', space=vmem, size = 0x2000, scoped, tag = 'output window, operand 0']
    #allocation3 [shape = 's32[2]{0}', space=sflag, size = 0x8, scoped, tag = 'scoped memory for tpu_custom_call.1']
    #allocation4 [shape = 'u8[32768]{0}', space=vmem, size = 0x8000, scoped, tag = 'output window, operand 1']
    #allocation5 [shape = 's32[2]{0}', space=sflag, size = 0x8, scoped, tag = 'scoped memory for tpu_custom_call.1']
    %21 = vsyncpa [#allocation3], 0
    %s22 = scalar_lea.sflag [#allocation3], 1
    %23 = vsyncpa %s22, 0
    %24 = vsyncpa [#allocation5], 0
    %s25 = scalar_lea.sflag [#allocation5], 1
    %26 = vsyncpa %s25, 0
    loop: start=0, step=1, limit=4
    $region2: #{tpu_custom_call.1} parent=1 // loop_pre_header
      _
    $region3: #{tpu_custom_call.1} parent=1 // loop_header
      %s28 = sphi 0, %s32
      %p29 = scmp.ge.s32.totalorder %s28, 4
      %s38 = sphi 0, %s40
      %s41 = sphi 0, %s38
      %s42 = sphi 0, %s41
      %s58 = sphi 0, %s42
      %s64 = sphi 0, %s66
      %s67 = sphi 0, %s64
      %s68 = sphi 0, %s67
      %s84 = sphi 0, %s68
      %s90 = sphi 0, %s92
      %s93 = sphi 0, %s90
      %s94 = sphi 0, %s93
      %s110 = sphi 0, %s94
      %s116 = sphi 0, %s118
      %s119 = sphi 0, %s116
      %s120 = sphi 0, %s119
      %s136 = sphi 0, %s120
      %s140 = sphi 0, %s140
      %s142 = sphi 0, %s140
      %s143 = sphi 0, %s142
      %s157 = sphi 0, %s143
      %s161 = sphi 0, %s161
      %s163 = sphi 0, %s161
      %s164 = sphi 0, %s163
      %s178 = sphi 0, %s164
      %s182 = sphi 0, %s182
      %s184 = sphi 0, %s182
      %s185 = sphi 0, %s184
      %s199 = sphi 0, %s185
      %s203 = sphi 0, %s203
      %s205 = sphi 0, %s203
      %s206 = sphi 0, %s205
      %s220 = sphi 0, %s206
      %s224 = sphi 0, %s224
      %s226 = sphi 0, %s224
      %s227 = sphi 0, %s226
      %s241 = sphi 0, %s227
      %s245 = sphi 0, %s245
      %s247 = sphi 0, %s245
      %s248 = sphi 0, %s247
      %s262 = sphi 0, %s248
      %s266 = sphi 0, %s266
      %s268 = sphi 0, %s266
      %s269 = sphi 0, %s268
      %s283 = sphi 0, %s269
      %s287 = sphi 0, %s287
      %s289 = sphi 0, %s287
      %s290 = sphi 0, %s289
      %s304 = sphi 0, %s290
      %s308 = sphi 0, %s308
      %s310 = sphi 0, %s308
      %s311 = sphi 0, %s310
      %s325 = sphi 0, %s311
      %s329 = sphi 0, %s329
      %s331 = sphi 0, %s329
      %s332 = sphi 0, %s331
      %s346 = sphi 0, %s332
      %s352 = sphi 0, %s354
      %s355 = sphi 0, %s352
      %s356 = sphi 0, %s355
      %s372 = sphi 0, %s356
      %s378 = sphi 0, %s380
      %s381 = sphi 0, %s378
      %s382 = sphi 0, %s381
      %s398 = sphi 0, %s382
    $region4: #{tpu_custom_call.1} parent=1 // loop_header_branch
      %31 = sbr.rel (%p29) target = $region8
    $region5: #{tpu_custom_call.1} parent=1 // loop_body
      %s33 = ssub.s32 %s28, 1
      %s34 = ssub.s32 %s28, 2
      %s35 = sadd.s32 %s28, 1
      %s36 = ssub.s32 %s28, %s35
      %p37 = scmp.eq.s32.totalorder %s36, 0
      %s39 = sadd.s32 %s38, 1
      %s40 = scalar_select %p37, %s38, %s39
      %p43 = pneg %p37
      %p44 = scmp.eq.s32.totalorder %s28, 1
      %p45 = por %p43, %p44
      %p46 = scmp.ne.s32.totalorder %s38, %s41
      %p47 = scmp.eq.s32.totalorder %s28, 0
      %p48 = por %p46, %p47
      %p49 = scmp.ne.s32.totalorder %s38, %s41
      %p50 = scmp.eq.s32.totalorder %s33, 1
      %p51 = por %p49, %p50
      %p52 = scmp.ne.s32.totalorder %s41, %s42
      %p53 = scmp.eq.s32.totalorder %s33, 0
      %p54 = por %p52, %p53
      %p55 = scmp.ne.s32.totalorder %s41, %s42
      %p56 = scmp.eq.s32.totalorder %s34, 1
      %p57 = por %p55, %p56
      %p59 = scmp.ne.s32.totalorder %s42, %s58
      %p60 = scmp.eq.s32.totalorder %s34, 0
      %p61 = por %p59, %p60
      %s62 = ssub.s32 %s28, %s35
      %p63 = scmp.eq.s32.totalorder %s62, 0
      %s65 = sadd.s32 %s64, 1
      %s66 = scalar_select %p63, %s64, %s65
      %p69 = pneg %p63
      %p70 = scmp.eq.s32.totalorder %s28, 1
      %p71 = por %p69, %p70
      %p72 = scmp.ne.s32.totalorder %s64, %s67
      %p73 = scmp.eq.s32.totalorder %s28, 0
      %p74 = por %p72, %p73
      %p75 = scmp.ne.s32.totalorder %s64, %s67
      %p76 = scmp.eq.s32.totalorder %s33, 1
      %p77 = por %p75, %p76
      %p78 = scmp.ne.s32.totalorder %s67, %s68
      %p79 = scmp.eq.s32.totalorder %s33, 0
      %p80 = por %p78, %p79
      %p81 = scmp.ne.s32.totalorder %s67, %s68
      %p82 = scmp.eq.s32.totalorder %s34, 1
      %p83 = por %p81, %p82
      %p85 = scmp.ne.s32.totalorder %s68, %s84
      %p86 = scmp.eq.s32.totalorder %s34, 0
      %p87 = por %p85, %p86
      %s88 = ssub.s32 %s28, %s35
      %p89 = scmp.eq.s32.totalorder %s88, 0
      %s91 = sadd.s32 %s90, 1
      %s92 = scalar_select %p89, %s90, %s91
      %p95 = pneg %p89
      %p96 = scmp.eq.s32.totalorder %s28, 1
      %p97 = por %p95, %p96
      %p98 = scmp.ne.s32.totalorder %s90, %s93
      %p99 = scmp.eq.s32.totalorder %s28, 0
      %p100 = por %p98, %p99
      %p101 = scmp.ne.s32.totalorder %s90, %s93
      %p102 = scmp.eq.s32.totalorder %s33, 1
      %p103 = por %p101, %p102
      %p104 = scmp.ne.s32.totalorder %s93, %s94
      %p105 = scmp.eq.s32.totalorder %s33, 0
      %p106 = por %p104, %p105
      %p107 = scmp.ne.s32.totalorder %s93, %s94
      %p108 = scmp.eq.s32.totalorder %s34, 1
      %p109 = por %p107, %p108
      %p111 = scmp.ne.s32.totalorder %s94, %s110
      %p112 = scmp.eq.s32.totalorder %s34, 0
      %p113 = por %p111, %p112
      %s114 = ssub.s32 %s28, %s35
      %p115 = scmp.eq.s32.totalorder %s114, 0
      %s117 = sadd.s32 %s116, 1
      %s118 = scalar_select %p115, %s116, %s117
      %p121 = pneg %p115
      %p122 = scmp.eq.s32.totalorder %s28, 1
      %p123 = por %p121, %p122
      %p124 = scmp.ne.s32.totalorder %s116, %s119
      %p125 = scmp.eq.s32.totalorder %s28, 0
      %p126 = por %p124, %p125
      %p127 = scmp.ne.s32.totalorder %s116, %s119
      %p128 = scmp.eq.s32.totalorder %s33, 1
      %p129 = por %p127, %p128
      %p130 = scmp.ne.s32.totalorder %s119, %s120
      %p131 = scmp.eq.s32.totalorder %s33, 0
      %p132 = por %p130, %p131
      %p133 = scmp.ne.s32.totalorder %s119, %s120
      %p134 = scmp.eq.s32.totalorder %s34, 1
      %p135 = por %p133, %p134
      %p137 = scmp.ne.s32.totalorder %s120, %s136
      %p138 = scmp.eq.s32.totalorder %s34, 0
      %p139 = por %p137, %p138
      %s141 = sadd.s32 %s140, 1
      %p144 = scmp.eq.s32.totalorder %s28, 1
      %p145 = scmp.ne.s32.totalorder %s140, %s142
      %p146 = scmp.eq.s32.totalorder %s28, 0
      %p147 = por %p145, %p146
      %p148 = scmp.ne.s32.totalorder %s140, %s142
      %p149 = scmp.eq.s32.totalorder %s33, 1
      %p150 = por %p148, %p149
      %p151 = scmp.ne.s32.totalorder %s142, %s143
      %p152 = scmp.eq.s32.totalorder %s33, 0
      %p153 = por %p151, %p152
      %p154 = scmp.ne.s32.totalorder %s142, %s143
      %p155 = scmp.eq.s32.totalorder %s34, 1
      %p156 = por %p154, %p155
      %p158 = scmp.ne.s32.totalorder %s143, %s157
      %p159 = scmp.eq.s32.totalorder %s34, 0
      %p160 = por %p158, %p159
      %s162 = sadd.s32 %s161, 1
      %p165 = scmp.eq.s32.totalorder %s28, 1
      %p166 = scmp.ne.s32.totalorder %s161, %s163
      %p167 = scmp.eq.s32.totalorder %s28, 0
      %p168 = por %p166, %p167
      %p169 = scmp.ne.s32.totalorder %s161, %s163
      %p170 = scmp.eq.s32.totalorder %s33, 1
      %p171 = por %p169, %p170
      %p172 = scmp.ne.s32.totalorder %s163, %s164
      %p173 = scmp.eq.s32.totalorder %s33, 0
      %p174 = por %p172, %p173
      %p175 = scmp.ne.s32.totalorder %s163, %s164
      %p176 = scmp.eq.s32.totalorder %s34, 1
      %p177 = por %p175, %p176
      %p179 = scmp.ne.s32.totalorder %s164, %s178
      %p180 = scmp.eq.s32.totalorder %s34, 0
      %p181 = por %p179, %p180
      %s183 = sadd.s32 %s182, 1
      %p186 = scmp.eq.s32.totalorder %s28, 1
      %p187 = scmp.ne.s32.totalorder %s182, %s184
      %p188 = scmp.eq.s32.totalorder %s28, 0
      %p189 = por %p187, %p188
      %p190 = scmp.ne.s32.totalorder %s182, %s184
      %p191 = scmp.eq.s32.totalorder %s33, 1
      %p192 = por %p190, %p191
      %p193 = scmp.ne.s32.totalorder %s184, %s185
      %p194 = scmp.eq.s32.totalorder %s33, 0
      %p195 = por %p193, %p194
      %p196 = scmp.ne.s32.totalorder %s184, %s185
      %p197 = scmp.eq.s32.totalorder %s34, 1
      %p198 = por %p196, %p197
      %p200 = scmp.ne.s32.totalorder %s185, %s199
      %p201 = scmp.eq.s32.totalorder %s34, 0
      %p202 = por %p200, %p201
      %s204 = sadd.s32 %s203, 1
      %p207 = scmp.eq.s32.totalorder %s28, 1
      %p208 = scmp.ne.s32.totalorder %s203, %s205
      %p209 = scmp.eq.s32.totalorder %s28, 0
      %p210 = por %p208, %p209
      %p211 = scmp.ne.s32.totalorder %s203, %s205
      %p212 = scmp.eq.s32.totalorder %s33, 1
      %p213 = por %p211, %p212
      %p214 = scmp.ne.s32.totalorder %s205, %s206
      %p215 = scmp.eq.s32.totalorder %s33, 0
      %p216 = por %p214, %p215
      %p217 = scmp.ne.s32.totalorder %s205, %s206
      %p218 = scmp.eq.s32.totalorder %s34, 1
      %p219 = por %p217, %p218
      %p221 = scmp.ne.s32.totalorder %s206, %s220
      %p222 = scmp.eq.s32.totalorder %s34, 0
      %p223 = por %p221, %p222
      %s225 = sadd.s32 %s224, 1
      %p228 = scmp.eq.s32.totalorder %s28, 1
      %p229 = scmp.ne.s32.totalorder %s224, %s226
      %p230 = scmp.eq.s32.totalorder %s28, 0
      %p231 = por %p229, %p230
      %p232 = scmp.ne.s32.totalorder %s224, %s226
      %p233 = scmp.eq.s32.totalorder %s33, 1
      %p234 = por %p232, %p233
      %p235 = scmp.ne.s32.totalorder %s226, %s227
      %p236 = scmp.eq.s32.totalorder %s33, 0
      %p237 = por %p235, %p236
      %p238 = scmp.ne.s32.totalorder %s226, %s227
      %p239 = scmp.eq.s32.totalorder %s34, 1
      %p240 = por %p238, %p239
      %p242 = scmp.ne.s32.totalorder %s227, %s241
      %p243 = scmp.eq.s32.totalorder %s34, 0
      %p244 = por %p242, %p243
      %s246 = sadd.s32 %s245, 1
      %p249 = scmp.eq.s32.totalorder %s28, 1
      %p250 = scmp.ne.s32.totalorder %s245, %s247
      %p251 = scmp.eq.s32.totalorder %s28, 0
      %p252 = por %p250, %p251
      %p253 = scmp.ne.s32.totalorder %s245, %s247
      %p254 = scmp.eq.s32.totalorder %s33, 1
      %p255 = por %p253, %p254
      %p256 = scmp.ne.s32.totalorder %s247, %s248
      %p257 = scmp.eq.s32.totalorder %s33, 0
      %p258 = por %p256, %p257
      %p259 = scmp.ne.s32.totalorder %s247, %s248
      %p260 = scmp.eq.s32.totalorder %s34, 1
      %p261 = por %p259, %p260
      %p263 = scmp.ne.s32.totalorder %s248, %s262
      %p264 = scmp.eq.s32.totalorder %s34, 0
      %p265 = por %p263, %p264
      %s267 = sadd.s32 %s266, 1
      %p270 = scmp.eq.s32.totalorder %s28, 1
      %p271 = scmp.ne.s32.totalorder %s266, %s268
      %p272 = scmp.eq.s32.totalorder %s28, 0
      %p273 = por %p271, %p272
      %p274 = scmp.ne.s32.totalorder %s266, %s268
      %p275 = scmp.eq.s32.totalorder %s33, 1
      %p276 = por %p274, %p275
      %p277 = scmp.ne.s32.totalorder %s268, %s269
      %p278 = scmp.eq.s32.totalorder %s33, 0
      %p279 = por %p277, %p278
      %p280 = scmp.ne.s32.totalorder %s268, %s269
      %p281 = scmp.eq.s32.totalorder %s34, 1
      %p282 = por %p280, %p281
      %p284 = scmp.ne.s32.totalorder %s269, %s283
      %p285 = scmp.eq.s32.totalorder %s34, 0
      %p286 = por %p284, %p285
      %s288 = sadd.s32 %s287, 1
      %p291 = scmp.eq.s32.totalorder %s28, 1
      %p292 = scmp.ne.s32.totalorder %s287, %s289
      %p293 = scmp.eq.s32.totalorder %s28, 0
      %p294 = por %p292, %p293
      %p295 = scmp.ne.s32.totalorder %s287, %s289
      %p296 = scmp.eq.s32.totalorder %s33, 1
      %p297 = por %p295, %p296
      %p298 = scmp.ne.s32.totalorder %s289, %s290
      %p299 = scmp.eq.s32.totalorder %s33, 0
      %p300 = por %p298, %p299
      %p301 = scmp.ne.s32.totalorder %s289, %s290
      %p302 = scmp.eq.s32.totalorder %s34, 1
      %p303 = por %p301, %p302
      %p305 = scmp.ne.s32.totalorder %s290, %s304
      %p306 = scmp.eq.s32.totalorder %s34, 0
      %p307 = por %p305, %p306
      %s309 = sadd.s32 %s308, 1
      %p312 = scmp.eq.s32.totalorder %s28, 1
      %p313 = scmp.ne.s32.totalorder %s308, %s310
      %p314 = scmp.eq.s32.totalorder %s28, 0
      %p315 = por %p313, %p314
      %p316 = scmp.ne.s32.totalorder %s308, %s310
      %p317 = scmp.eq.s32.totalorder %s33, 1
      %p318 = por %p316, %p317
      %p319 = scmp.ne.s32.totalorder %s310, %s311
      %p320 = scmp.eq.s32.totalorder %s33, 0
      %p321 = por %p319, %p320
      %p322 = scmp.ne.s32.totalorder %s310, %s311
      %p323 = scmp.eq.s32.totalorder %s34, 1
      %p324 = por %p322, %p323
      %p326 = scmp.ne.s32.totalorder %s311, %s325
      %p327 = scmp.eq.s32.totalorder %s34, 0
      %p328 = por %p326, %p327
      %s330 = sadd.s32 %s329, 1
      %p333 = scmp.eq.s32.totalorder %s28, 1
      %p334 = scmp.ne.s32.totalorder %s329, %s331
      %p335 = scmp.eq.s32.totalorder %s28, 0
      %p336 = por %p334, %p335
      %p337 = scmp.ne.s32.totalorder %s329, %s331
      %p338 = scmp.eq.s32.totalorder %s33, 1
      %p339 = por %p337, %p338
      %p340 = scmp.ne.s32.totalorder %s331, %s332
      %p341 = scmp.eq.s32.totalorder %s33, 0
      %p342 = por %p340, %p341
      %p343 = scmp.ne.s32.totalorder %s331, %s332
      %p344 = scmp.eq.s32.totalorder %s34, 1
      %p345 = por %p343, %p344
      %p347 = scmp.ne.s32.totalorder %s332, %s346
      %p348 = scmp.eq.s32.totalorder %s34, 0
      %p349 = por %p347, %p348
      %s350 = ssub.s32 %s28, %s35
      %p351 = scmp.eq.s32.totalorder %s350, 0
      %s353 = sadd.s32 %s352, 1
      %s354 = scalar_select %p351, %s352, %s353
      %p357 = pneg %p351
      %p358 = scmp.eq.s32.totalorder %s28, 1
      %p359 = por %p357, %p358
      %p360 = scmp.ne.s32.totalorder %s352, %s355
      %p361 = scmp.eq.s32.totalorder %s28, 0
      %p362 = por %p360, %p361
      %p363 = scmp.ne.s32.totalorder %s352, %s355
      %p364 = scmp.eq.s32.totalorder %s33, 1
      %p365 = por %p363, %p364
      %p366 = scmp.ne.s32.totalorder %s355, %s356
      %p367 = scmp.eq.s32.totalorder %s33, 0
      %p368 = por %p366, %p367
      %p369 = scmp.ne.s32.totalorder %s355, %s356
      %p370 = scmp.eq.s32.totalorder %s34, 1
      %p371 = por %p369, %p370
      %p373 = scmp.ne.s32.totalorder %s356, %s372
      %p374 = scmp.eq.s32.totalorder %s34, 0
      %p375 = por %p373, %p374
      %s376 = ssub.s32 %s28, %s35
      %p377 = scmp.eq.s32.totalorder %s376, 0
      %s379 = sadd.s32 %s378, 1
      %s380 = scalar_select %p377, %s378, %s379
      %p383 = pneg %p377
      %p384 = scmp.eq.s32.totalorder %s28, 1
      %p385 = por %p383, %p384
      %p386 = scmp.ne.s32.totalorder %s378, %s381
      %p387 = scmp.eq.s32.totalorder %s28, 0
      %p388 = por %p386, %p387
      %p389 = scmp.ne.s32.totalorder %s378, %s381
      %p390 = scmp.eq.s32.totalorder %s33, 1
      %p391 = por %p389, %p390
      %p392 = scmp.ne.s32.totalorder %s381, %s382
      %p393 = scmp.eq.s32.totalorder %s33, 0
      %p394 = por %p392, %p393
      %p395 = scmp.ne.s32.totalorder %s381, %s382
      %p396 = scmp.eq.s32.totalorder %s34, 1
      %p397 = por %p395, %p396
      %p399 = scmp.ne.s32.totalorder %s382, %s398
      %p400 = scmp.eq.s32.totalorder %s34, 0
      %p401 = por %p399, %p400
      %p402 = scmp.le.s32.totalorder 1, %s28
      %p403 = scmp.lt.s32.totalorder %s28, 3
      %p404 = pnand %p402, %p403
      %p405 = pneg %p404
      // Predicated region
      $region9: #{tpu_custom_call.1} parent=5 // pred_check
        _
      $region10: #{tpu_custom_call.1} parent=5 // pred_check_branch
        %407 = sbr.rel (%p404) target = $region12
      $region11: #{tpu_custom_call.1} parent=5 // pred_region
        %s408 = ssub.s32 %s28, 1
        // Predicated region
        $region13: #{tpu_custom_call.1} parent=11 // pred_check
          %p409 = pneg %p153
        $region14: #{tpu_custom_call.1} parent=11 // pred_check_branch
          %411 = sbr.rel (%p409) target = $region16
        $region15: #{tpu_custom_call.1} parent=11 // pred_region
          _
        $region16: #{tpu_custom_call.1} parent=11 // pred_fallthru
          _
        // Predicated region
        $region17: #{tpu_custom_call.1} parent=11 // pred_check
          %p412 = pneg %p174
        $region18: #{tpu_custom_call.1} parent=11 // pred_check_branch
          %414 = sbr.rel (%p412) target = $region20
        $region19: #{tpu_custom_call.1} parent=11 // pred_region
          _
        $region20: #{tpu_custom_call.1} parent=11 // pred_fallthru
          _
        // Predicated region
        $region21: #{tpu_custom_call.1} parent=11 // pred_check
          %p415 = pneg %p195
        $region22: #{tpu_custom_call.1} parent=11 // pred_check_branch
          %417 = sbr.rel (%p415) target = $region24
        $region23: #{tpu_custom_call.1} parent=11 // pred_region
          _
        $region24: #{tpu_custom_call.1} parent=11 // pred_fallthru
          _
        // Predicated region
        $region25: #{tpu_custom_call.1} parent=11 // pred_check
          %p418 = pneg %p216
        $region26: #{tpu_custom_call.1} parent=11 // pred_check_branch
          %420 = sbr.rel (%p418) target = $region28
        $region27: #{tpu_custom_call.1} parent=11 // pred_region
          _
        $region28: #{tpu_custom_call.1} parent=11 // pred_fallthru
          _
        // Predicated region
        $region29: #{tpu_custom_call.1} parent=11 // pred_check
          %p421 = pneg %p237
        $region30: #{tpu_custom_call.1} parent=11 // pred_check_branch
          %423 = sbr.rel (%p421) target = $region32
        $region31: #{tpu_custom_call.1} parent=11 // pred_region
          _
        $region32: #{tpu_custom_call.1} parent=11 // pred_fallthru
          _
        // Predicated region
        $region33: #{tpu_custom_call.1} parent=11 // pred_check
          %p424 = pneg %p258
        $region34: #{tpu_custom_call.1} parent=11 // pred_check_branch
          %426 = sbr.rel (%p424) target = $region36
        $region35: #{tpu_custom_call.1} parent=11 // pred_region
          _
        $region36: #{tpu_custom_call.1} parent=11 // pred_fallthru
          _
        // Predicated region
        $region37: #{tpu_custom_call.1} parent=11 // pred_check
          %p427 = pneg %p279
        $region38: #{tpu_custom_call.1} parent=11 // pred_check_branch
          %429 = sbr.rel (%p427) target = $region40
        $region39: #{tpu_custom_call.1} parent=11 // pred_region
          _
        $region40: #{tpu_custom_call.1} parent=11 // pred_fallthru
          _
        // Predicated region
        $region41: #{tpu_custom_call.1} parent=11 // pred_check
          %p430 = pneg %p300
        $region42: #{tpu_custom_call.1} parent=11 // pred_check_branch
          %432 = sbr.rel (%p430) target = $region44
        $region43: #{tpu_custom_call.1} parent=11 // pred_region
          _
        $region44: #{tpu_custom_call.1} parent=11 // pred_fallthru
          _
        // Predicated region
        $region45: #{tpu_custom_call.1} parent=11 // pred_check
          %p433 = pneg %p321
        $region46: #{tpu_custom_call.1} parent=11 // pred_check_branch
          %435 = sbr.rel (%p433) target = $region48
        $region47: #{tpu_custom_call.1} parent=11 // pred_region
          _
        $region48: #{tpu_custom_call.1} parent=11 // pred_fallthru
          _
        // Predicated region
        $region49: #{tpu_custom_call.1} parent=11 // pred_check
          %p436 = pneg %p342
        $region50: #{tpu_custom_call.1} parent=11 // pred_check_branch
          %438 = sbr.rel (%p436) target = $region52
        $region51: #{tpu_custom_call.1} parent=11 // pred_region
          _
        $region52: #{tpu_custom_call.1} parent=11 // pred_fallthru
          _
      $region12: #{tpu_custom_call.1} parent=5 // pred_fallthru
        _
      %p439 = scmp.lt.s32.totalorder %s28, 2
      // Predicated region
      $region53: #{tpu_custom_call.1} parent=5 // pred_check
        %p440 = pneg %p439
      $region54: #{tpu_custom_call.1} parent=5 // pred_check_branch
        %442 = sbr.rel (%p440) target = $region56
      $region55: #{tpu_custom_call.1} parent=5 // pred_region
        // Predicated region
        $region57: #{tpu_custom_call.1} parent=55 // pred_check
          %p443 = pneg %p48
        $region58: #{tpu_custom_call.1} parent=55 // pred_check_branch
          %445 = sbr.rel (%p443) target = $region60
        $region59: #{tpu_custom_call.1} parent=55 // pred_region
          %p446 = scmp.lt.s32.totalorder %s28, 1
          %s447 = scalar_select %p446, %s28, 1
          %s448 = smul.addr %s447, 8
          %s449 = scalar_lea.vmem %s0, %s448
        $region60: #{tpu_custom_call.1} parent=55 // pred_fallthru
          _
        // Predicated region
        $region61: #{tpu_custom_call.1} parent=55 // pred_check
          %p450 = pneg %p74
        $region62: #{tpu_custom_call.1} parent=55 // pred_check_branch
          %452 = sbr.rel (%p450) target = $region64
        $region63: #{tpu_custom_call.1} parent=55 // pred_region
          %p453 = scmp.lt.s32.totalorder %s28, 1
          %s454 = scalar_select %p453, %s28, 1
          %s455 = smul.addr %s454, 8
          %s456 = scalar_lea.vmem %s1, %s455
        $region64: #{tpu_custom_call.1} parent=55 // pred_fallthru
          _
        // Predicated region
        $region65: #{tpu_custom_call.1} parent=55 // pred_check
          %p457 = pneg %p100
        $region66: #{tpu_custom_call.1} parent=55 // pred_check_branch
          %459 = sbr.rel (%p457) target = $region68
        $region67: #{tpu_custom_call.1} parent=55 // pred_region
          %p460 = scmp.lt.s32.totalorder %s28, 1
          %s461 = scalar_select %p460, %s28, 1
          %s462 = smul.addr %s461, 8
          %s463 = scalar_lea.vmem %s2, %s462
        $region68: #{tpu_custom_call.1} parent=55 // pred_fallthru
          _
        // Predicated region
        $region69: #{tpu_custom_call.1} parent=55 // pred_check
          %p464 = pneg %p126
        $region70: #{tpu_custom_call.1} parent=55 // pred_check_branch
          %466 = sbr.rel (%p464) target = $region72
        $region71: #{tpu_custom_call.1} parent=55 // pred_region
          %p467 = scmp.lt.s32.totalorder %s28, 1
          %s468 = scalar_select %p467, %s28, 1
          %s469 = smul.addr %s468, 8
          %s470 = scalar_lea.vmem %s3, %s469
        $region72: #{tpu_custom_call.1} parent=55 // pred_fallthru
          _
      $region56: #{tpu_custom_call.1} parent=5 // pred_fallthru
        _
      %p471 = scmp.le.s32.totalorder 1, %s28
      %p472 = scmp.lt.s32.totalorder %s28, 3
      %p473 = pnand %p471, %p472
      %p474 = pneg %p473
      // Predicated region
      $region73: #{tpu_custom_call.1} parent=5 // pred_check
        _
      $region74: #{tpu_custom_call.1} parent=5 // pred_check_branch
        %476 = sbr.rel (%p473) target = $region76
      $region75: #{tpu_custom_call.1} parent=5 // pred_region
        %s477 = ssub.s32 %s28, 1
        %p478 = scmp.lt.s32.totalorder %s33, 1
        %s479 = scalar_select %p478, %s33, 1
        %s480 = smul.addr %s479, 8
        %s481 = scalar_lea.vmem %s0, %s480
        %p482 = pneg %p54
        %p483 = pneg %p51
        %p484 = scmp.lt.s32.totalorder %s33, 1
        %s485 = scalar_select %p484, %s33, 1
        %s486 = smul.addr %s485, 8
        %s487 = scalar_lea.vmem %s1, %s486
        %p488 = pneg %p80
        %p489 = pneg %p77
        %p490 = scmp.lt.s32.totalorder %s33, 1
        %s491 = scalar_select %p490, %s33, 1
        %s492 = smul.addr %s491, 8
        %s493 = scalar_lea.vmem %s2, %s492
        %p494 = pneg %p106
        %p495 = pneg %p103
        %p496 = scmp.lt.s32.totalorder %s33, 1
        %s497 = scalar_select %p496, %s33, 1
        %s498 = smul.addr %s497, 8
        %s499 = scalar_lea.vmem %s3, %s498
        %p500 = pneg %p132
        %p501 = pneg %p129
        %p502 = pneg %p153
        %p503 = pneg %p150
        %p504 = pneg %p174
        %p505 = pneg %p171
        %p506 = pneg %p195
        %p507 = pneg %p192
        %p508 = pneg %p216
        %p509 = pneg %p213
        %p510 = pneg %p237
        %p511 = pneg %p234
        %p512 = pneg %p258
        %p513 = pneg %p255
        %p514 = pneg %p279
        %p515 = pneg %p276
        %p516 = pneg %p300
        %p517 = pneg %p297
        %p518 = pneg %p321
        %p519 = pneg %p318
        %p520 = pneg %p342
        %p521 = pneg %p339
        %p522 = pneg %p368
        %p523 = pneg %p365
        %s524 = sand.u32 %s355, 1
        %s525 = scalar_lea.sflag [#allocation3], %s524
        %s526 = sand.u32 %s355, 1
        %s527 = smul.addr %s526, 8
        %s528 = scalar_lea.vmem [#allocation2], %s527
        %p529 = pneg %p394
        %p530 = pneg %p391
        %s531 = sand.u32 %s381, 1
        %s532 = scalar_lea.sflag [#allocation5], %s531
        %s533 = sand.u32 %s381, 1
        %s534 = smul.addr %s533, 32
        %s535 = scalar_lea.vmem [#allocation4], %s534
        %p536 = scmp.lt.s32.totalorder %s33, 1
        %s537 = scalar_select %p536, %s33, 1
        %s538 = smul.addr %s537, 8
        %s539 = scalar_lea.vmem %s0, %s538
        %p540 = scmp.lt.s32.totalorder %s33, 1
        %s541 = scalar_select %p540, %s33, 1
        %s542 = smul.addr %s541, 8
        %s543 = scalar_lea.vmem %s1, %s542
        %p544 = scmp.lt.s32.totalorder %s33, 1
        %s545 = scalar_select %p544, %s33, 1
        %s546 = smul.addr %s545, 8
        %s547 = scalar_lea.vmem %s2, %s546
        %p548 = scmp.lt.s32.totalorder %s33, 1
        %s549 = scalar_select %p548, %s33, 1
        %s550 = smul.addr %s549, 8
        %s551 = scalar_lea.vmem %s3, %s550
        %v552 = vld [vmem:[%s539] sm:$0xff]
        %v553 = vld [vmem:[%s543] sm:$0xff]
        %v554 = vld [vmem:[%s547] sm:$0xff]
        %v555 = vld [vmem:[%s4] sm:$0xff]
        %v556 = vld [vmem:[%s4 + $0x8] sm:$0xff]
        %v557 = vld [vmem:[%s4 + $0x10] sm:$0xff]
        %v558 = vld [vmem:[%s4 + $0x18] sm:$0xff]
        %v559 = vld [vmem:[%s4 + $0x20] sm:$0xff]
        %v560 = vld [vmem:[%s4 + $0x28] sm:$0xff]
        %v561 = vld [vmem:[%s4 + $0x30] sm:$0xff]
        %v562 = vld [vmem:[%s4 + $0x38] sm:$0xff]
        %v563 = vld [vmem:[%s4 + $0x40] sm:$0xff]
        %v564 = vld [vmem:[%s4 + $0x48] sm:$0xff]
        %v565 = vld [vmem:[%s4 + $0x50] sm:$0xff]
        %v566 = vld [vmem:[%s4 + $0x58] sm:$0xff]
        %v567 = vld [vmem:[%s4 + $0x60] sm:$0xff]
        %v568 = vld [vmem:[%s4 + $0x68] sm:$0xff]
        %v569 = vld [vmem:[%s4 + $0x70] sm:$0xff]
        %v570 = vld [vmem:[%s4 + $0x78] sm:$0xff]
        %v571 = vld [vmem:[%s5] sm:$0x1]
        %v572 = vld [vmem:[%s5 + $0x1] sm:$0x1]
        %v573 = vld [vmem:[%s5 + $0x2] sm:$0x1]
        %v574 = vld [vmem:[%s5 + $0x3] sm:$0x1]
        %v579 = vperm.slane %v571, 0
        %v580 = vperm.slane %v572, 0
        %v581 = vperm.slane %v573, 0
        %v582 = vperm.slane %v574, 0
        %vm587 = vcmask 261120
        %v589 = vsel %vm587, %v552, 0
        %591 = vmatpush.msra.mxu0 0.0
        %592 = vmatpush.msra.mxu0 0.0
        %593 = vmatpush.msra.mxu0 0.0
        %594 = vmatpush.msra.mxu0 0.0
        %595 = vmatpush.msra.mxu0 0.0
        %596 = vmatpush.msra.mxu0 0.0
        %597 = vmatpush.msra.mxu0 0.0
        %598 = vmatpush.msra.mxu0 0.0
        %599 = vmatpush.msra.mxu0 0.0
        %600 = vmatpush.msra.mxu0 0.0
        %601 = vmatpush.msra.mxu0 0.0
        %602 = vmatpush.msra.mxu0 0.0
        %603 = vmatpush.msra.mxu0 %v558
        %604 = vmatpush.msra.mxu0 %v557
        %605 = vmatpush.msra.mxu0 %v556
        %606 = vmatpush.msra.mxu0 %v555
        %607 = vmatmul.f32.gmra.mxu0 %v589
        %v608 = vpop.f32.mrf.mxu0
        %v609 = vadd.f32 %v579, %v608
        %610 = vdwg.mxu0
        %611 = vmatpush.msra.mxu0 0.0
        %612 = vmatpush.msra.mxu0 0.0
        %613 = vmatpush.msra.mxu0 0.0
        %614 = vmatpush.msra.mxu0 0.0
        %615 = vmatpush.msra.mxu0 0.0
        %616 = vmatpush.msra.mxu0 0.0
        %617 = vmatpush.msra.mxu0 0.0
        %618 = vmatpush.msra.mxu0 0.0
        %619 = vmatpush.msra.mxu0 0.0
        %620 = vmatpush.msra.mxu0 0.0
        %621 = vmatpush.msra.mxu0 0.0
        %622 = vmatpush.msra.mxu0 0.0
        %623 = vmatpush.msra.mxu0 %v562
        %624 = vmatpush.msra.mxu0 %v561
        %625 = vmatpush.msra.mxu0 %v560
        %626 = vmatpush.msra.mxu0 %v559
        %627 = vmatmul.f32.gmra.mxu0 %v589
        %v628 = vpop.f32.mrf.mxu0
        %v629 = vadd.f32 %v580, %v628
        %630 = vdwg.mxu0
        %631 = vmatpush.msra.mxu0 0.0
        %632 = vmatpush.msra.mxu0 0.0
        %633 = vmatpush.msra.mxu0 0.0
        %634 = vmatpush.msra.mxu0 0.0
        %635 = vmatpush.msra.mxu0 0.0
        %636 = vmatpush.msra.mxu0 0.0
        %637 = vmatpush.msra.mxu0 0.0
        %638 = vmatpush.msra.mxu0 0.0
        %639 = vmatpush.msra.mxu0 0.0
        %640 = vmatpush.msra.mxu0 0.0
        %641 = vmatpush.msra.mxu0 0.0
        %642 = vmatpush.msra.mxu0 0.0
        %643 = vmatpush.msra.mxu0 %v566
        %644 = vmatpush.msra.mxu0 %v565
        %645 = vmatpush.msra.mxu0 %v564
        %646 = vmatpush.msra.mxu0 %v563
        %647 = vmatmul.f32.gmra.mxu0 %v589
        %v648 = vpop.f32.mrf.mxu0
        %v649 = vadd.f32 %v581, %v648
        %650 = vdwg.mxu0
        %651 = vmatpush.msra.mxu0 0.0
        %652 = vmatpush.msra.mxu0 0.0
        %653 = vmatpush.msra.mxu0 0.0
        %654 = vmatpush.msra.mxu0 0.0
        %655 = vmatpush.msra.mxu0 0.0
        %656 = vmatpush.msra.mxu0 0.0
        %657 = vmatpush.msra.mxu0 0.0
        %658 = vmatpush.msra.mxu0 0.0
        %659 = vmatpush.msra.mxu0 0.0
        %660 = vmatpush.msra.mxu0 0.0
        %661 = vmatpush.msra.mxu0 0.0
        %662 = vmatpush.msra.mxu0 0.0
        %663 = vmatpush.msra.mxu0 %v570
        %664 = vmatpush.msra.mxu0 %v569
        %665 = vmatpush.msra.mxu0 %v568
        %666 = vmatpush.msra.mxu0 %v567
        %667 = vmatmul.f32.gmra.mxu0 %v589
        %v668 = vpop.f32.mrf.mxu0
        %v669 = vadd.f32 %v582, %v668
        %670 = vdwg.mxu0
        %v671 = vmul.f32 %v609, 0.35355338
        %v672 = vmul.f32 %v629, 0.35355338
        %v673 = vmul.f32 %v649, 0.35355338
        %v674 = vmul.f32 %v669, 0.35355338
        %v675 = vld [vmem:[%s6] sm:$0xff]
        %v676 = vld [vmem:[%s6 + $0x8] sm:$0xff]
        %v677 = vld [vmem:[%s6 + $0x10] sm:$0xff]
        %v678 = vld [vmem:[%s6 + $0x18] sm:$0xff]
        %v679 = vld [vmem:[%s6 + $0x20] sm:$0xff]
        %v680 = vld [vmem:[%s6 + $0x28] sm:$0xff]
        %v681 = vld [vmem:[%s6 + $0x30] sm:$0xff]
        %v682 = vld [vmem:[%s6 + $0x38] sm:$0xff]
        %v683 = vld [vmem:[%s6 + $0x40] sm:$0xff]
        %v684 = vld [vmem:[%s6 + $0x48] sm:$0xff]
        %v685 = vld [vmem:[%s6 + $0x50] sm:$0xff]
        %v686 = vld [vmem:[%s6 + $0x58] sm:$0xff]
        %v687 = vld [vmem:[%s6 + $0x60] sm:$0xff]
        %v688 = vld [vmem:[%s6 + $0x68] sm:$0xff]
        %v689 = vld [vmem:[%s6 + $0x70] sm:$0xff]
        %v690 = vld [vmem:[%s6 + $0x78] sm:$0xff]
        %v691 = vld [vmem:[%s7] sm:$0x1]
        %v692 = vld [vmem:[%s7 + $0x1] sm:$0x1]
        %v693 = vld [vmem:[%s7 + $0x2] sm:$0x1]
        %v694 = vld [vmem:[%s7 + $0x3] sm:$0x1]
        %v699 = vperm.slane %v691, 0
        %v700 = vperm.slane %v692, 0
        %v701 = vperm.slane %v693, 0
        %v702 = vperm.slane %v694, 0
        %v708 = vsel %vm587, %v553, 0
        %710 = vmatpush.msra.mxu0 0.0
        %711 = vmatpush.msra.mxu0 0.0
        %712 = vmatpush.msra.mxu0 0.0
        %713 = vmatpush.msra.mxu0 0.0
        %714 = vmatpush.msra.mxu0 0.0
        %715 = vmatpush.msra.mxu0 0.0
        %716 = vmatpush.msra.mxu0 0.0
        %717 = vmatpush.msra.mxu0 0.0
        %718 = vmatpush.msra.mxu0 0.0
        %719 = vmatpush.msra.mxu0 0.0
        %720 = vmatpush.msra.mxu0 0.0
        %721 = vmatpush.msra.mxu0 0.0
        %722 = vmatpush.msra.mxu0 %v678
        %723 = vmatpush.msra.mxu0 %v677
        %724 = vmatpush.msra.mxu0 %v676
        %725 = vmatpush.msra.mxu0 %v675
        %726 = vmatmul.f32.gmra.mxu0 %v708
        %v727 = vpop.f32.mrf.mxu0
        %v728 = vadd.f32 %v699, %v727
        %729 = vdwg.mxu0
        %730 = vmatpush.msra.mxu0 0.0
        %731 = vmatpush.msra.mxu0 0.0
        %732 = vmatpush.msra.mxu0 0.0
        %733 = vmatpush.msra.mxu0 0.0
        %734 = vmatpush.msra.mxu0 0.0
        %735 = vmatpush.msra.mxu0 0.0
        %736 = vmatpush.msra.mxu0 0.0
        %737 = vmatpush.msra.mxu0 0.0
        %738 = vmatpush.msra.mxu0 0.0
        %739 = vmatpush.msra.mxu0 0.0
        %740 = vmatpush.msra.mxu0 0.0
        %741 = vmatpush.msra.mxu0 0.0
        %742 = vmatpush.msra.mxu0 %v682
        %743 = vmatpush.msra.mxu0 %v681
        %744 = vmatpush.msra.mxu0 %v680
        %745 = vmatpush.msra.mxu0 %v679
        %746 = vmatmul.f32.gmra.mxu0 %v708
        %v747 = vpop.f32.mrf.mxu0
        %v748 = vadd.f32 %v700, %v747
        %749 = vdwg.mxu0
        %750 = vmatpush.msra.mxu0 0.0
        %751 = vmatpush.msra.mxu0 0.0
        %752 = vmatpush.msra.mxu0 0.0
        %753 = vmatpush.msra.mxu0 0.0
        %754 = vmatpush.msra.mxu0 0.0
        %755 = vmatpush.msra.mxu0 0.0
        %756 = vmatpush.msra.mxu0 0.0
        %757 = vmatpush.msra.mxu0 0.0
        %758 = vmatpush.msra.mxu0 0.0
        %759 = vmatpush.msra.mxu0 0.0
        %760 = vmatpush.msra.mxu0 0.0
        %761 = vmatpush.msra.mxu0 0.0
        %762 = vmatpush.msra.mxu0 %v686
        %763 = vmatpush.msra.mxu0 %v685
        %764 = vmatpush.msra.mxu0 %v684
        %765 = vmatpush.msra.mxu0 %v683
        %766 = vmatmul.f32.gmra.mxu0 %v708
        %v767 = vpop.f32.mrf.mxu0
        %v768 = vadd.f32 %v701, %v767
        %769 = vdwg.mxu0
        %770 = vmatpush.msra.mxu0 0.0
        %771 = vmatpush.msra.mxu0 0.0
        %772 = vmatpush.msra.mxu0 0.0
        %773 = vmatpush.msra.mxu0 0.0
        %774 = vmatpush.msra.mxu0 0.0
        %775 = vmatpush.msra.mxu0 0.0
        %776 = vmatpush.msra.mxu0 0.0
        %777 = vmatpush.msra.mxu0 0.0
        %778 = vmatpush.msra.mxu0 0.0
        %779 = vmatpush.msra.mxu0 0.0
        %780 = vmatpush.msra.mxu0 0.0
        %781 = vmatpush.msra.mxu0 0.0
        %782 = vmatpush.msra.mxu0 %v690
        %783 = vmatpush.msra.mxu0 %v689
        %784 = vmatpush.msra.mxu0 %v688
        %785 = vmatpush.msra.mxu0 %v687
        %786 = vmatmul.f32.gmra.mxu0 %v708
        %v787 = vpop.f32.mrf.mxu0
        %v788 = vadd.f32 %v702, %v787
        %789 = vdwg.mxu0
        %v790 = vld [vmem:[%s8] sm:$0xff]
        %v791 = vld [vmem:[%s8 + $0x8] sm:$0xff]
        %v792 = vld [vmem:[%s8 + $0x10] sm:$0xff]
        %v793 = vld [vmem:[%s8 + $0x18] sm:$0xff]
        %v794 = vld [vmem:[%s8 + $0x20] sm:$0xff]
        %v795 = vld [vmem:[%s8 + $0x28] sm:$0xff]
        %v796 = vld [vmem:[%s8 + $0x30] sm:$0xff]
        %v797 = vld [vmem:[%s8 + $0x38] sm:$0xff]
        %v798 = vld [vmem:[%s8 + $0x40] sm:$0xff]
        %v799 = vld [vmem:[%s8 + $0x48] sm:$0xff]
        %v800 = vld [vmem:[%s8 + $0x50] sm:$0xff]
        %v801 = vld [vmem:[%s8 + $0x58] sm:$0xff]
        %v802 = vld [vmem:[%s8 + $0x60] sm:$0xff]
        %v803 = vld [vmem:[%s8 + $0x68] sm:$0xff]
        %v804 = vld [vmem:[%s8 + $0x70] sm:$0xff]
        %v805 = vld [vmem:[%s8 + $0x78] sm:$0xff]
        %v806 = vld [vmem:[%s9] sm:$0x1]
        %v807 = vld [vmem:[%s9 + $0x1] sm:$0x1]
        %v808 = vld [vmem:[%s9 + $0x2] sm:$0x1]
        %v809 = vld [vmem:[%s9 + $0x3] sm:$0x1]
        %v814 = vperm.slane %v806, 0
        %v815 = vperm.slane %v807, 0
        %v816 = vperm.slane %v808, 0
        %v817 = vperm.slane %v809, 0
        %v823 = vsel %vm587, %v554, 0
        %825 = vmatpush.msra.mxu0 0.0
        %826 = vmatpush.msra.mxu0 0.0
        %827 = vmatpush.msra.mxu0 0.0
        %828 = vmatpush.msra.mxu0 0.0
        %829 = vmatpush.msra.mxu0 0.0
        %830 = vmatpush.msra.mxu0 0.0
        %831 = vmatpush.msra.mxu0 0.0
        %832 = vmatpush.msra.mxu0 0.0
        %833 = vmatpush.msra.mxu0 0.0
        %834 = vmatpush.msra.mxu0 0.0
        %835 = vmatpush.msra.mxu0 0.0
        %836 = vmatpush.msra.mxu0 0.0
        %837 = vmatpush.msra.mxu0 %v793
        %838 = vmatpush.msra.mxu0 %v792
        %839 = vmatpush.msra.mxu0 %v791
        %840 = vmatpush.msra.mxu0 %v790
        %841 = vmatmul.f32.gmra.mxu0 %v823
        %v842 = vpop.f32.mrf.mxu0
        %v843 = vadd.f32 %v814, %v842
        %844 = vdwg.mxu0
        %845 = vmatpush.msra.mxu0 0.0
        %846 = vmatpush.msra.mxu0 0.0
        %847 = vmatpush.msra.mxu0 0.0
        %848 = vmatpush.msra.mxu0 0.0
        %849 = vmatpush.msra.mxu0 0.0
        %850 = vmatpush.msra.mxu0 0.0
        %851 = vmatpush.msra.mxu0 0.0
        %852 = vmatpush.msra.mxu0 0.0
        %853 = vmatpush.msra.mxu0 0.0
        %854 = vmatpush.msra.mxu0 0.0
        %855 = vmatpush.msra.mxu0 0.0
        %856 = vmatpush.msra.mxu0 0.0
        %857 = vmatpush.msra.mxu0 %v797
        %858 = vmatpush.msra.mxu0 %v796
        %859 = vmatpush.msra.mxu0 %v795
        %860 = vmatpush.msra.mxu0 %v794
        %861 = vmatmul.f32.gmra.mxu0 %v823
        %v862 = vpop.f32.mrf.mxu0
        %v863 = vadd.f32 %v815, %v862
        %864 = vdwg.mxu0
        %865 = vmatpush.msra.mxu0 0.0
        %866 = vmatpush.msra.mxu0 0.0
        %867 = vmatpush.msra.mxu0 0.0
        %868 = vmatpush.msra.mxu0 0.0
        %869 = vmatpush.msra.mxu0 0.0
        %870 = vmatpush.msra.mxu0 0.0
        %871 = vmatpush.msra.mxu0 0.0
        %872 = vmatpush.msra.mxu0 0.0
        %873 = vmatpush.msra.mxu0 0.0
        %874 = vmatpush.msra.mxu0 0.0
        %875 = vmatpush.msra.mxu0 0.0
        %876 = vmatpush.msra.mxu0 0.0
        %877 = vmatpush.msra.mxu0 %v801
        %878 = vmatpush.msra.mxu0 %v800
        %879 = vmatpush.msra.mxu0 %v799
        %880 = vmatpush.msra.mxu0 %v798
        %881 = vmatmul.f32.gmra.mxu0 %v823
        %v882 = vpop.f32.mrf.mxu0
        %v883 = vadd.f32 %v816, %v882
        %884 = vdwg.mxu0
        %885 = vmatpush.msra.mxu0 0.0
        %886 = vmatpush.msra.mxu0 0.0
        %887 = vmatpush.msra.mxu0 0.0
        %888 = vmatpush.msra.mxu0 0.0
        %889 = vmatpush.msra.mxu0 0.0
        %890 = vmatpush.msra.mxu0 0.0
        %891 = vmatpush.msra.mxu0 0.0
        %892 = vmatpush.msra.mxu0 0.0
        %893 = vmatpush.msra.mxu0 0.0
        %894 = vmatpush.msra.mxu0 0.0
        %895 = vmatpush.msra.mxu0 0.0
        %896 = vmatpush.msra.mxu0 0.0
        %897 = vmatpush.msra.mxu0 %v805
        %898 = vmatpush.msra.mxu0 %v804
        %899 = vmatpush.msra.mxu0 %v803
        %900 = vmatpush.msra.mxu0 %v802
        %901 = vmatmul.f32.gmra.mxu0 %v823
        %v902 = vpop.f32.mrf.mxu0
        %v903 = vadd.f32 %v817, %v902
        %904 = vdwg.mxu0
        %v905 = vld [vmem:[%s551] sm:$0xff]
        %vm906 = vcmask 64512
        %v908 = vsel %vm906, %v671, 0
        %v911 = vsel %vm906, %v728, 0
        %913 = vmatpush.xpose.msra.mxu0 0.0
        %914 = vmatpush.xpose.msra.mxu0 0.0
        %915 = vmatpush.xpose.msra.mxu0 0.0
        %916 = vmatpush.xpose.msra.mxu0 0.0
        %917 = vmatpush.xpose.msra.mxu0 0.0
        %918 = vmatpush.xpose.msra.mxu0 0.0
        %919 = vmatpush.xpose.msra.mxu0 0.0
        %920 = vmatpush.xpose.msra.mxu0 0.0
        %921 = vmatpush.xpose.msra.mxu0 0.0
        %922 = vmatpush.xpose.msra.mxu0 0.0
        %923 = vmatpush.xpose.msra.mxu0 0.0
        %924 = vmatpush.xpose.msra.mxu0 0.0
        %925 = vmatpush.xpose.msra.mxu0 0.0
        %926 = vmatpush.xpose.msra.mxu0 0.0
        %927 = vmatpush.xpose.msra.mxu0 0.0
        %928 = vmatpush.xpose.msra.mxu0 %v911
        %929 = vmatmul.f32.gmra.mxu0 %v908
        %v930 = vpop.f32.mrf.mxu0
        %v931 = vadd.f32 %v905, %v930
        %932 = vdwg.mxu0
        %v934 = vsel %vm906, %v672, 0
        %v937 = vsel %vm906, %v748, 0
        %939 = vmatpush.xpose.msra.mxu0 0.0
        %940 = vmatpush.xpose.msra.mxu0 0.0
        %941 = vmatpush.xpose.msra.mxu0 0.0
        %942 = vmatpush.xpose.msra.mxu0 0.0
        %943 = vmatpush.xpose.msra.mxu0 0.0
        %944 = vmatpush.xpose.msra.mxu0 0.0
        %945 = vmatpush.xpose.msra.mxu0 0.0
        %946 = vmatpush.xpose.msra.mxu0 0.0
        %947 = vmatpush.xpose.msra.mxu0 0.0
        %948 = vmatpush.xpose.msra.mxu0 0.0
        %949 = vmatpush.xpose.msra.mxu0 0.0
        %950 = vmatpush.xpose.msra.mxu0 0.0
        %951 = vmatpush.xpose.msra.mxu0 0.0
        %952 = vmatpush.xpose.msra.mxu0 0.0
        %953 = vmatpush.xpose.msra.mxu0 0.0
        %954 = vmatpush.xpose.msra.mxu0 %v937
        %955 = vmatmul.f32.gmra.mxu0 %v934
        %v956 = vpop.f32.mrf.mxu0
        %v957 = vadd.f32 %v905, %v956
        %958 = vdwg.mxu0
        %v960 = vsel %vm906, %v673, 0
        %v963 = vsel %vm906, %v768, 0
        %965 = vmatpush.xpose.msra.mxu0 0.0
        %966 = vmatpush.xpose.msra.mxu0 0.0
        %967 = vmatpush.xpose.msra.mxu0 0.0
        %968 = vmatpush.xpose.msra.mxu0 0.0
        %969 = vmatpush.xpose.msra.mxu0 0.0
        %970 = vmatpush.xpose.msra.mxu0 0.0
        %971 = vmatpush.xpose.msra.mxu0 0.0
        %972 = vmatpush.xpose.msra.mxu0 0.0
        %973 = vmatpush.xpose.msra.mxu0 0.0
        %974 = vmatpush.xpose.msra.mxu0 0.0
        %975 = vmatpush.xpose.msra.mxu0 0.0
        %976 = vmatpush.xpose.msra.mxu0 0.0
        %977 = vmatpush.xpose.msra.mxu0 0.0
        %978 = vmatpush.xpose.msra.mxu0 0.0
        %979 = vmatpush.xpose.msra.mxu0 0.0
        %980 = vmatpush.xpose.msra.mxu0 %v963
        %981 = vmatmul.f32.gmra.mxu0 %v960
        %v982 = vpop.f32.mrf.mxu0
        %v983 = vadd.f32 %v905, %v982
        %984 = vdwg.mxu0
        %v986 = vsel %vm906, %v674, 0
        %v989 = vsel %vm906, %v788, 0
        %991 = vmatpush.xpose.msra.mxu0 0.0
        %992 = vmatpush.xpose.msra.mxu0 0.0
        %993 = vmatpush.xpose.msra.mxu0 0.0
        %994 = vmatpush.xpose.msra.mxu0 0.0
        %995 = vmatpush.xpose.msra.mxu0 0.0
        %996 = vmatpush.xpose.msra.mxu0 0.0
        %997 = vmatpush.xpose.msra.mxu0 0.0
        %998 = vmatpush.xpose.msra.mxu0 0.0
        %999 = vmatpush.xpose.msra.mxu0 0.0
        %1000 = vmatpush.xpose.msra.mxu0 0.0
        %1001 = vmatpush.xpose.msra.mxu0 0.0
        %1002 = vmatpush.xpose.msra.mxu0 0.0
        %1003 = vmatpush.xpose.msra.mxu0 0.0
        %1004 = vmatpush.xpose.msra.mxu0 0.0
        %1005 = vmatpush.xpose.msra.mxu0 0.0
        %1006 = vmatpush.xpose.msra.mxu0 %v989
        %1007 = vmatmul.f32.gmra.mxu0 %v986
        %v1008 = vpop.f32.mrf.mxu0
        %v1009 = vadd.f32 %v905, %v1008
        %1010 = vdwg.mxu0
        %v1011 = vsel %vm906, %v931, -inf
        %1012 = vmax.xlane.f32.xlu0 %v1011
        %v1013 = vpop.xlane.xlu0 %1012
        %v1014 = vsel %vm906, %v957, -inf
        %1015 = vmax.xlane.f32.xlu0 %v1014
        %v1016 = vpop.xlane.xlu0 %1015
        %v1017 = vsel %vm906, %v983, -inf
        %1018 = vmax.xlane.f32.xlu0 %v1017
        %v1019 = vpop.xlane.xlu0 %1018
        %v1020 = vsel %vm906, %v1009, -inf
        %1021 = vmax.xlane.f32.xlu0 %v1020
        %v1022 = vpop.xlane.xlu0 %1021
        %v1023 = vsub.f32 %v931, %v1013
        %v1024 = vsub.f32 %v957, %v1016
        %v1025 = vsub.f32 %v983, %v1019
        %v1026 = vsub.f32 %v1009, %v1022
        %v1027 = vmul.f32 %v1023, 1.442695
        %v1028 = vpow.pop %v1027
        %v1029 = vmul.f32 %v1024, 1.442695
        %v1030 = vpow.pop %v1029
        %v1031 = vmul.f32 %v1025, 1.442695
        %v1032 = vpow.pop %v1031
        %v1033 = vmul.f32 %v1026, 1.442695
        %v1034 = vpow.pop %v1033
        %v1035 = vsel %vm906, %v1028, 0.0
        %1036 = vadd.xlane.f32.xlu0 %v1035
        %v1037 = vpop.xlane.xlu0 %1036
        %v1038 = vsel %vm906, %v1030, 0.0
        %1039 = vadd.xlane.f32.xlu0 %v1038
        %v1040 = vpop.xlane.xlu0 %1039
        %v1041 = vsel %vm906, %v1032, 0.0
        %1042 = vadd.xlane.f32.xlu0 %v1041
        %v1043 = vpop.xlane.xlu0 %1042
        %v1044 = vsel %vm906, %v1034, 0.0
        %1045 = vadd.xlane.f32.xlu0 %v1044
        %v1046 = vpop.xlane.xlu0 %1045
        %v1047 = vrcp.pop %v1037
        %v1048 = vmul.f32 %v1037, %v1047
        %v1049 = vsub.f32 1.0, %v1048
        %v1050 = vmul.f32 %v1047, %v1049
        %v1051 = vadd.f32 %v1047, %v1050
        %vm1052 = vweird.f32 %v1037
        %vm1053 = vweird.f32 %v1047
        %vm1054 = vmor %vm1052, %vm1053
        %v1055 = vsel %vm1054, %v1047, %v1051
        %v1056 = vand.u32 2147483647, %v1037
        %vm1057 = vcmp.eq.f32.partialorder %v1056, 8.507059e+37
        %v1058 = vand.u32 %v1037, 2147483648
        %v1059 = vor.u32 1.1754944e-38, %v1058
        %v1060 = vsel %vm1057, %v1059, %v1055
        %v1061 = vmul.f32 %v1028, %v1060
        %v1062 = vrcp.pop %v1040
        %v1063 = vmul.f32 %v1040, %v1062
        %v1064 = vsub.f32 1.0, %v1063
        %v1065 = vmul.f32 %v1062, %v1064
        %v1066 = vadd.f32 %v1062, %v1065
        %vm1067 = vweird.f32 %v1040
        %vm1068 = vweird.f32 %v1062
        %vm1069 = vmor %vm1067, %vm1068
        %v1070 = vsel %vm1069, %v1062, %v1066
        %v1071 = vand.u32 2147483647, %v1040
        %vm1072 = vcmp.eq.f32.partialorder %v1071, 8.507059e+37
        %v1073 = vand.u32 %v1040, 2147483648
        %v1074 = vor.u32 1.1754944e-38, %v1073
        %v1075 = vsel %vm1072, %v1074, %v1070
        %v1076 = vmul.f32 %v1030, %v1075
        %v1077 = vrcp.pop %v1043
        %v1078 = vmul.f32 %v1043, %v1077
        %v1079 = vsub.f32 1.0, %v1078
        %v1080 = vmul.f32 %v1077, %v1079
        %v1081 = vadd.f32 %v1077, %v1080
        %vm1082 = vweird.f32 %v1043
        %vm1083 = vweird.f32 %v1077
        %vm1084 = vmor %vm1082, %vm1083
        %v1085 = vsel %vm1084, %v1077, %v1081
        %v1086 = vand.u32 2147483647, %v1043
        %vm1087 = vcmp.eq.f32.partialorder %v1086, 8.507059e+37
        %v1088 = vand.u32 %v1043, 2147483648
        %v1089 = vor.u32 1.1754944e-38, %v1088
        %v1090 = vsel %vm1087, %v1089, %v1085
        %v1091 = vmul.f32 %v1032, %v1090
        %v1092 = vrcp.pop %v1046
        %v1093 = vmul.f32 %v1046, %v1092
        %v1094 = vsub.f32 1.0, %v1093
        %v1095 = vmul.f32 %v1092, %v1094
        %v1096 = vadd.f32 %v1092, %v1095
        %vm1097 = vweird.f32 %v1046
        %vm1098 = vweird.f32 %v1092
        %vm1099 = vmor %vm1097, %vm1098
        %v1100 = vsel %vm1099, %v1092, %v1096
        %v1101 = vand.u32 2147483647, %v1046
        %vm1102 = vcmp.eq.f32.partialorder %v1101, 8.507059e+37
        %v1103 = vand.u32 %v1046, 2147483648
        %v1104 = vor.u32 1.1754944e-38, %v1103
        %v1105 = vsel %vm1102, %v1104, %v1100
        %v1106 = vmul.f32 %v1034, %v1105
        %1107 = vst.msk [vmem:[%s535] sm:$0xff] %vm906, %v1061
        %1108 = vst.msk [vmem:[%s535 + $0x8] sm:$0xff] %vm906, %v1076
        %1109 = vst.msk [vmem:[%s535 + $0x10] sm:$0xff] %vm906, %v1091
        %1110 = vst.msk [vmem:[%s535 + $0x18] sm:$0xff] %vm906, %v1106
        %v1112 = vsel %vm906, %v1061, 0
        %1114 = vmatpush.msra.mxu0 0.0
        %1115 = vmatpush.msra.mxu0 0.0
        %1116 = vmatpush.msra.mxu0 0.0
        %1117 = vmatpush.msra.mxu0 0.0
        %1118 = vmatpush.msra.mxu0 0.0
        %1119 = vmatpush.msra.mxu0 0.0
        %1120 = vmatpush.msra.mxu0 0.0
        %1121 = vmatpush.msra.mxu0 0.0
        %1122 = vmatpush.msra.mxu0 0.0
        %1123 = vmatpush.msra.mxu0 0.0
        %1124 = vmatpush.msra.mxu0 0.0
        %1125 = vmatpush.msra.mxu0 0.0
        %1126 = vmatpush.msra.mxu0 0.0
        %1127 = vmatpush.msra.mxu0 0.0
        %1128 = vmatpush.msra.mxu0 0.0
        %1129 = vmatpush.msra.mxu0 %v843
        %1130 = vmatmul.f32.gmra.mxu0 %v1112
        %v1131 = vpop.f32.mrf.mxu0
        %v1132 = vadd.f32 0.0, %v1131
        %1133 = vdwg.mxu0
        %v1135 = vsel %vm906, %v1076, 0
        %1137 = vmatpush.msra.mxu0 0.0
        %1138 = vmatpush.msra.mxu0 0.0
        %1139 = vmatpush.msra.mxu0 0.0
        %1140 = vmatpush.msra.mxu0 0.0
        %1141 = vmatpush.msra.mxu0 0.0
        %1142 = vmatpush.msra.mxu0 0.0
        %1143 = vmatpush.msra.mxu0 0.0
        %1144 = vmatpush.msra.mxu0 0.0
        %1145 = vmatpush.msra.mxu0 0.0
        %1146 = vmatpush.msra.mxu0 0.0
        %1147 = vmatpush.msra.mxu0 0.0
        %1148 = vmatpush.msra.mxu0 0.0
        %1149 = vmatpush.msra.mxu0 0.0
        %1150 = vmatpush.msra.mxu0 0.0
        %1151 = vmatpush.msra.mxu0 0.0
        %1152 = vmatpush.msra.mxu0 %v863
        %1153 = vmatmul.f32.gmra.mxu0 %v1135
        %v1154 = vpop.f32.mrf.mxu0
        %v1155 = vadd.f32 0.0, %v1154
        %1156 = vdwg.mxu0
        %v1158 = vsel %vm906, %v1091, 0
        %1160 = vmatpush.msra.mxu0 0.0
        %1161 = vmatpush.msra.mxu0 0.0
        %1162 = vmatpush.msra.mxu0 0.0
        %1163 = vmatpush.msra.mxu0 0.0
        %1164 = vmatpush.msra.mxu0 0.0
        %1165 = vmatpush.msra.mxu0 0.0
        %1166 = vmatpush.msra.mxu0 0.0
        %1167 = vmatpush.msra.mxu0 0.0
        %1168 = vmatpush.msra.mxu0 0.0
        %1169 = vmatpush.msra.mxu0 0.0
        %1170 = vmatpush.msra.mxu0 0.0
        %1171 = vmatpush.msra.mxu0 0.0
        %1172 = vmatpush.msra.mxu0 0.0
        %1173 = vmatpush.msra.mxu0 0.0
        %1174 = vmatpush.msra.mxu0 0.0
        %1175 = vmatpush.msra.mxu0 %v883
        %1176 = vmatmul.f32.gmra.mxu0 %v1158
        %v1177 = vpop.f32.mrf.mxu0
        %v1178 = vadd.f32 0.0, %v1177
        %1179 = vdwg.mxu0
        %v1181 = vsel %vm906, %v1106, 0
        %1183 = vmatpush.msra.mxu0 0.0
        %1184 = vmatpush.msra.mxu0 0.0
        %1185 = vmatpush.msra.mxu0 0.0
        %1186 = vmatpush.msra.mxu0 0.0
        %1187 = vmatpush.msra.mxu0 0.0
        %1188 = vmatpush.msra.mxu0 0.0
        %1189 = vmatpush.msra.mxu0 0.0
        %1190 = vmatpush.msra.mxu0 0.0
        %1191 = vmatpush.msra.mxu0 0.0
        %1192 = vmatpush.msra.mxu0 0.0
        %1193 = vmatpush.msra.mxu0 0.0
        %1194 = vmatpush.msra.mxu0 0.0
        %1195 = vmatpush.msra.mxu0 0.0
        %1196 = vmatpush.msra.mxu0 0.0
        %1197 = vmatpush.msra.mxu0 0.0
        %1198 = vmatpush.msra.mxu0 %v903
        %1199 = vmatmul.f32.gmra.mxu0 %v1181
        %v1200 = vpop.f32.mrf.mxu0
        %v1201 = vadd.f32 0.0, %v1200
        %1202 = vdwg.mxu0
        %v1203 = vld [vmem:[%s10] sm:$0xff]
        %v1204 = vld [vmem:[%s10 + $0x8] sm:$0xff]
        %v1205 = vld [vmem:[%s10 + $0x10] sm:$0xff]
        %v1206 = vld [vmem:[%s10 + $0x18] sm:$0xff]
        %v1208 = vsel %vm906, %v1132, 0
        %1210 = vmatpush.msra.mxu0 0.0
        %1211 = vmatpush.msra.mxu0 0.0
        %1212 = vmatpush.msra.mxu0 0.0
        %1213 = vmatpush.msra.mxu0 0.0
        %1214 = vmatpush.msra.mxu0 0.0
        %1215 = vmatpush.msra.mxu0 0.0
        %1216 = vmatpush.msra.mxu0 0.0
        %1217 = vmatpush.msra.mxu0 0.0
        %1218 = vmatpush.msra.mxu0 0.0
        %1219 = vmatpush.msra.mxu0 0.0
        %1220 = vmatpush.msra.mxu0 0.0
        %1221 = vmatpush.msra.mxu0 0.0
        %1222 = vmatpush.msra.mxu0 0.0
        %1223 = vmatpush.msra.mxu0 0.0
        %1224 = vmatpush.msra.mxu0 0.0
        %1225 = vmatpush.msra.mxu0 %v1203
        %1226 = vmatmul.f32.gmra.mxu0 %v1208
        %v1227 = vpop.f32.mrf.mxu0
        %v1228 = vadd.f32 0.0, %v1227
        %1229 = vdwg.mxu0
        %v1231 = vsel %vm906, %v1155, 0
        %1233 = vmatpush.msra.mxu0 0.0
        %1234 = vmatpush.msra.mxu0 0.0
        %1235 = vmatpush.msra.mxu0 0.0
        %1236 = vmatpush.msra.mxu0 0.0
        %1237 = vmatpush.msra.mxu0 0.0
        %1238 = vmatpush.msra.mxu0 0.0
        %1239 = vmatpush.msra.mxu0 0.0
        %1240 = vmatpush.msra.mxu0 0.0
        %1241 = vmatpush.msra.mxu0 0.0
        %1242 = vmatpush.msra.mxu0 0.0
        %1243 = vmatpush.msra.mxu0 0.0
        %1244 = vmatpush.msra.mxu0 0.0
        %1245 = vmatpush.msra.mxu0 0.0
        %1246 = vmatpush.msra.mxu0 0.0
        %1247 = vmatpush.msra.mxu0 0.0
        %1248 = vmatpush.msra.mxu0 %v1204
        %1249 = vmatmul.f32.gmra.mxu0 %v1231
        %v1250 = vpop.f32.mrf.mxu0
        %v1251 = vadd.f32 0.0, %v1250
        %1252 = vdwg.mxu0
        %v1254 = vsel %vm906, %v1178, 0
        %1256 = vmatpush.msra.mxu0 0.0
        %1257 = vmatpush.msra.mxu0 0.0
        %1258 = vmatpush.msra.mxu0 0.0
        %1259 = vmatpush.msra.mxu0 0.0
        %1260 = vmatpush.msra.mxu0 0.0
        %1261 = vmatpush.msra.mxu0 0.0
        %1262 = vmatpush.msra.mxu0 0.0
        %1263 = vmatpush.msra.mxu0 0.0
        %1264 = vmatpush.msra.mxu0 0.0
        %1265 = vmatpush.msra.mxu0 0.0
        %1266 = vmatpush.msra.mxu0 0.0
        %1267 = vmatpush.msra.mxu0 0.0
        %1268 = vmatpush.msra.mxu0 0.0
        %1269 = vmatpush.msra.mxu0 0.0
        %1270 = vmatpush.msra.mxu0 0.0
        %1271 = vmatpush.msra.mxu0 %v1205
        %1272 = vmatmul.f32.gmra.mxu0 %v1254
        %v1273 = vpop.f32.mrf.mxu0
        %v1274 = vadd.f32 0.0, %v1273
        %1275 = vdwg.mxu0
        %v1277 = vsel %vm906, %v1201, 0
        %1279 = vmatpush.msra.mxu0 0.0
        %1280 = vmatpush.msra.mxu0 0.0
        %1281 = vmatpush.msra.mxu0 0.0
        %1282 = vmatpush.msra.mxu0 0.0
        %1283 = vmatpush.msra.mxu0 0.0
        %1284 = vmatpush.msra.mxu0 0.0
        %1285 = vmatpush.msra.mxu0 0.0
        %1286 = vmatpush.msra.mxu0 0.0
        %1287 = vmatpush.msra.mxu0 0.0
        %1288 = vmatpush.msra.mxu0 0.0
        %1289 = vmatpush.msra.mxu0 0.0
        %1290 = vmatpush.msra.mxu0 0.0
        %1291 = vmatpush.msra.mxu0 0.0
        %1292 = vmatpush.msra.mxu0 0.0
        %1293 = vmatpush.msra.mxu0 0.0
        %1294 = vmatpush.msra.mxu0 %v1206
        %1295 = vmatmul.f32.gmra.mxu0 %v1277
        %v1296 = vpop.f32.mrf.mxu0
        %v1297 = vadd.f32 0.0, %v1296
        %1298 = vdwg.mxu0
        %v1299 = vsel %vm587, %v1228, 0.0
        %v1300 = vsel %vm587, %v1251, 0.0
        %v1301 = vadd.f32 %v1299, %v1300
        %v1302 = vsel %vm587, %v1274, 0.0
        %v1303 = vadd.f32 %v1301, %v1302
        %v1304 = vsel %vm587, %v1297, 0.0
        %v1305 = vadd.f32 %v1303, %v1304
        %v1306 = vld [vmem:[%s11] sm:$0x1]
        %v1308 = vperm.slane %v1306, 0
        %v1310 = vadd.f32 %v1305, %v1308
        %v1311 = vadd.f32 %v1310, %v552
        %v1312 = vsel %vm587, %v1311, 0.0
        %1313 = vadd.xlane.f32.xlu0 %v1312
        %v1314 = vpop.xlane.xlu0 %1313
        %v1315 = vrcp.pop 32.0
        %v1316 = vmul.f32 32.0, %v1315
        %v1317 = vsub.f32 1.0, %v1316
        %v1318 = vmul.f32 %v1315, %v1317
        %v1319 = vadd.f32 %v1315, %v1318
        %vm1320 = vweird.f32 %v1315
        %v1321 = vsel %vm1320, %v1315, %v1319
        %v1322 = vmul.f32 %v1314, %v1321
        %v1323 = vsub.f32 %v1311, %v1322
        %v1324 = vmul.f32 %v1323, %v1323
        %v1325 = vsel %vm587, %v1324, 0.0
        %1326 = vadd.xlane.f32.xlu0 %v1325
        %v1327 = vpop.xlane.xlu0 %1326
        %v1328 = vmul.f32 %v1327, %v1321
        %v1329 = vadd.f32 %v1328, 1e-05
        %v1330 = vrsqrt.pop %v1329
        %v1331 = vmul.f32 %v1330, %v1329
        %v1332 = vmul.f32 %v1331, %v1330
        %v1333 = vmul.f32 0.5, %v1332
        %v1334 = vsub.f32 1.5, %v1333
        %v1335 = vmul.f32 %v1330, %v1334
        %vm1336 = vweird.f32 %v1329
        %vm1337 = vweird.f32 %v1330
        %vm1338 = vmor %vm1336, %vm1337
        %v1339 = vsel %vm1338, %v1330, %v1335
        %v1340 = vmul.f32 %v1323, %v1339
        %v1341 = vld [vmem:[%s12] sm:$0x1]
        %v1343 = vperm.slane %v1341, 0
        %v1345 = vmul.f32 %v1340, %v1343
        %v1346 = vld [vmem:[%s13] sm:$0x1]
        %v1348 = vperm.slane %v1346, 0
        %v1350 = vadd.f32 %v1345, %v1348
        %1351 = vst.msk [vmem:[%s528] sm:$0xff] %vm587, %v1350
        %s1352 = sand.u32 %s355, 1
        %s1353 = scalar_lea.sflag [#allocation3], %s1352
        %s1354 = sand.u32 %s355, 1
        %s1355 = smul.addr %s1354, 8
        %s1356 = scalar_lea.vmem [#allocation2], %s1355
        %s1357 = sand.u32 %s381, 1
        %s1358 = scalar_lea.sflag [#allocation5], %s1357
        %s1359 = sand.u32 %s381, 1
        %s1360 = smul.addr %s1359, 32
        %s1361 = scalar_lea.vmem [#allocation4], %s1360
        // Predicated region
        $region77: #{tpu_custom_call.1} parent=75 // pred_check
          %p1362 = pneg %p365
        $region78: #{tpu_custom_call.1} parent=75 // pred_check_branch
          %1364 = sbr.rel (%p1362) target = $region80
        $region79: #{tpu_custom_call.1} parent=75 // pred_region
          %1366 = vsyncadd %s1353, 0
          %s1367 = smul.addr %s33, 8
          %s1368 = scalar_lea.hbm %s14, %s1367
          %s1370 = sshll.u32 %s1356, 4
          %s1371 = int_to_ptr.vmem [resolvable:$true] %s1370
          %s1372 = sshll.u32 %s1368, 4
          %s1373 = int_to_ptr.hbm [resolvable:$true] %s1372
          %1375 = dma.vmem_to_hbm [thread:$0]  %s1371, 128, %s1373, %s1353
        $region80: #{tpu_custom_call.1} parent=75 // pred_fallthru
          _
        // Predicated region
        $region81: #{tpu_custom_call.1} parent=75 // pred_check
          %p1376 = pneg %p391
        $region82: #{tpu_custom_call.1} parent=75 // pred_check_branch
          %1378 = sbr.rel (%p1376) target = $region84
        $region83: #{tpu_custom_call.1} parent=75 // pred_region
          %1380 = vsyncadd %s1358, 0
          %s1381 = smul.addr %s33, 4
          %s1382 = smul.addr %s1381, 8
          %s1383 = scalar_lea.hbm %s15, %s1382
          %s1384 = sshll.u32 %s1361, 4
          %s1385 = int_to_ptr.vmem [resolvable:$true] %s1384
          %s1386 = sshll.u32 %s1383, 4
          %s1387 = int_to_ptr.hbm [resolvable:$true] %s1386
          %1392 = dma.vmem_to_hbm [thread:$0]  %s1385, 512, %s1387, %s1358, 128, 128, 8
        $region84: #{tpu_custom_call.1} parent=75 // pred_fallthru
          _
      $region76: #{tpu_custom_call.1} parent=5 // pred_fallthru
        _
      %p1393 = scmp.le.s32.totalorder 2, %s28
      // Predicated region
      $region85: #{tpu_custom_call.1} parent=5 // pred_check
        %p1394 = pneg %p1393
      $region86: #{tpu_custom_call.1} parent=5 // pred_check_branch
        %1396 = sbr.rel (%p1394) target = $region88
      $region87: #{tpu_custom_call.1} parent=5 // pred_region
        %s1397 = ssub.s32 %s28, 2
        // Predicated region
        $region89: #{tpu_custom_call.1} parent=87 // pred_check
          %p1398 = pneg %p371
        $region90: #{tpu_custom_call.1} parent=87 // pred_check_branch
          %1400 = sbr.rel (%p1398) target = $region92
        $region91: #{tpu_custom_call.1} parent=87 // pred_region
          %s1401 = sand.u32 %s356, 1
          %s1402 = scalar_lea.sflag [#allocation3], %s1401
          %s1403 = sand.u32 %s356, 1
          %s1404 = smul.addr %s1403, 8
          %s1405 = scalar_lea.vmem [#allocation2], %s1404
          %1407 = dma.done %s1402, 128
        $region92: #{tpu_custom_call.1} parent=87 // pred_fallthru
          _
        // Predicated region
        $region93: #{tpu_custom_call.1} parent=87 // pred_check
          %p1408 = pneg %p397
        $region94: #{tpu_custom_call.1} parent=87 // pred_check_branch
          %1410 = sbr.rel (%p1408) target = $region96
        $region95: #{tpu_custom_call.1} parent=87 // pred_region
          %s1411 = sand.u32 %s382, 1
          %s1412 = scalar_lea.sflag [#allocation5], %s1411
          %s1413 = sand.u32 %s382, 1
          %s1414 = smul.addr %s1413, 32
          %s1415 = scalar_lea.vmem [#allocation4], %s1414
          %1417 = dma.done %s1412, 512
        $region96: #{tpu_custom_call.1} parent=87 // pred_fallthru
          _
      $region88: #{tpu_custom_call.1} parent=5 // pred_fallthru
        _
    $region6: #{tpu_custom_call.1} parent=1 // loop_footer
      %s32 = sadd.s32 1, %s28
    $region7: #{tpu_custom_call.1} parent=1 // loop_footer_branch
      %27 = sbr.rel target = $region3
    $region8: #{tpu_custom_call.1} parent=1 // loop_exit
      _
    %1418 = vsyncpa [#allocation3], 1
    %s1419 = scalar_lea.sflag [#allocation3], 1
    %1420 = vsyncpa %s1419, 1
    %1421 = vsyncpa [#allocation5], 1
    %s1422 = scalar_lea.sflag [#allocation5], 1
    %1423 = vsyncpa %s1422, 1

</llo_original>
